<compile_context>
chip_gen: v6e
topology: v6e:2x2x1
jax: 0.10.0
libtpu: 0.0.40
codegen_flags: <defaults>
</compile_context>

<pallas_src>
import functools

import jax
import jax.numpy as jnp
from jax.experimental import pallas as pl
from jax.experimental.pallas import tpu as pltpu


def lstm_model_kernel(x_ref, w_ref, p_ref, out_ref):
    SB, F = x_ref.shape
    G = w_ref.shape[1]              # 4*H
    H = G // 4
    L = w_ref.shape[0] // (2 * H)
    Bp, O = out_ref.shape
    S = SB // Bp

    # ---- static row offsets inside the packed f32 parameter slab ----
    r_b1 = F
    r_bias = F + 1
    r_w2 = F + 2
    r_b2 = F + 2 + L * O

    # ---- parameter loads (once, outside the recurrence) ----
    w1 = p_ref[0:F, 0:H]                                    # (F, H)  f32
    b1 = p_ref[r_b1:r_b1 + 1, 0:H]                          # (1, H)  f32
    b0 = p_ref[r_bias:r_bias + 1, 0:G]                      # (1, 4H) f32 (g cols pre-scaled)
    wih = [w_ref[l * H:(l + 1) * H, :] for l in range(L)]            # (H, 4H) bf16
    whh = [w_ref[(L + l) * H:(L + l + 1) * H, :] for l in range(L)]  # (H, 4H) bf16
    # Hoisted bias broadcasts for layers >= 1 (would otherwise be emitted S times).
    bias_b = [jnp.broadcast_to(p_ref[r_bias:r_bias + 1, l * G:(l + 1) * G], (Bp, G))
              for l in range(1, L)]

    # ---- linear_1 + ReLU for every timestep at once ----
    if F == 1:
        # (SB,1)@(1,H) is a broadcast multiply; skip the K=1 MXU op.
        x_act = jnp.maximum(x_ref[...] * w1 + b1, 0.0)
    else:
        x_act = jnp.maximum(
            jnp.dot(x_ref[...].astype(jnp.bfloat16), w1.astype(jnp.bfloat16),
                    preferred_element_type=jnp.float32) + b1, 0.0)

    # ---- hoisted layer-0 input projection for ALL timesteps (off the h->h chain)
    g0_all = jnp.dot(x_act.astype(jnp.bfloat16), wih[0],
                     preferred_element_type=jnp.float32) + b0        # (S*Bp, 4H)

    # PyTorch default initial state: zeros.  Register-resident throughout.
    zeros = jnp.zeros((Bp, H), jnp.float32)
    h = [zeros for _ in range(L)]
    c = [zeros for _ in range(L)]

    def cell(gates, c_prev):
        # One full-width sigmoid per cell; tanh(g) is recovered as 2*sigmoid(2g)-1
        # (g-gate columns were pre-scaled by 2 in prepare_params), so the only
        # other EUP push is tanh(c_new).
        sg = jax.nn.sigmoid(gates)
        i_g = sg[:, 0 * H:1 * H]
        f_g = sg[:, 1 * H:2 * H]
        g_g = 2.0 * sg[:, 2 * H:3 * H] - 1.0
        o_g = sg[:, 3 * H:4 * H]
        c_new = f_g * c_prev + i_g * g_g
        h_new = o_g * jnp.tanh(c_new)
        return h_new, c_new

    # Fully unrolled recurrence (S small & static): LLO sees across steps and
    # every slice below is static and tile-aligned (Bp is a sublane multiple).
    for t in range(S):
        # Recurrent W_hh contributions: each depends only on its own layer's
        # previous-step h, so these dots leave the serial chain and overlap with
        # the other layers' cell math (extra MXU pushes are free here).
        r = [jnp.dot(h[l].astype(jnp.bfloat16), whh[l],
                     preferred_element_type=jnp.float32) for l in range(L)]
        # Layer 0: input projection already hoisted; only add + cell remain.
        h[0], c[0] = cell(g0_all[t * Bp:(t + 1) * Bp, :] + r[0], c[0])
        # Layers >= 1: only h_{l-1,t} @ W_ih stays on the critical path; the
        # W_hh part (r[l]) plus its pre-broadcast bias were formed off-path.
        for l in range(1, L):
            g = jnp.dot(h[l - 1].astype(jnp.bfloat16), wih[l],
                        preferred_element_type=jnp.float32) + (r[l] + bias_b[l - 1])
            h[l], c[l] = cell(g, c[l])

    # ---- linear_2 over concat(h_n), done per layer (no lane concat).
    # TODO(synk): nn.Dropout is identity in eval mode; no RNG mask applied here.
    b2 = p_ref[r_b2:r_b2 + 1, 0:O]
    out = jnp.broadcast_to(b2, (Bp, O))
    if O == 1:
        # VPU multiply + lane reduction instead of lane-sparse N=1 MXU pushes.
        for l in range(L):
            w2_l = p_ref[r_w2 + l:r_w2 + l + 1, 0:H]                 # (1, H)
            out = out + jnp.sum(h[l] * w2_l, axis=-1, keepdims=True)
    else:
        for l in range(L):
            w2_l = p_ref[r_w2 + l * O:r_w2 + (l + 1) * O, 0:H]       # (O, H)
            out = out + jax.lax.dot_general(
                h[l].astype(jnp.bfloat16), w2_l.astype(jnp.bfloat16),
                (((1,), (1,)), ((), ())), preferred_element_type=jnp.float32)
    out_ref[...] = out.astype(out_ref.dtype)


def prepare_params(params):
    """One-time packing of model parameters into the two kernel input slabs.

    w_slab (bf16, (2*L*H, 4H)): rows [l*H:(l+1)*H]       = W_ih[l]  (in,out layout)
                                rows [(L+l)*H:(L+l+1)*H] = W_hh[l]
    p_slab (f32,  (ceil8(F+3+L*O), max(4H*L, 128))):
        rows 0:F          lanes 0:H      linear_1 weight
        row  F            lanes 0:H      linear_1 bias
        row  F+1          lanes 0:4H*L   LSTM biases (b_ih + b_hh, per layer)
        rows F+2:F+2+L*O  lanes 0:H      linear_2 weight rows (layer-major)
        row  F+2+L*O      lanes 0:O      linear_2 bias
    The g-gate columns [2H:3H] of W_ih/W_hh/bias are pre-scaled by 2 so the
    kernel can use tanh(g) = 2*sigmoid(2g) - 1.
    NOTE: `bias` must be the pre-summed b_ih + b_hh when loading real PyTorch weights.
    """
    w1, b1, wih, whh, bias, w2, b2 = params
    F, H = w1.shape
    L = wih.shape[0]
    O = w2.shape[0]
    G = 4 * H

    gscale = jnp.ones((G,), jnp.float32).at[2 * H:3 * H].set(2.0)
    wih_s = (wih * gscale).astype(jnp.bfloat16)          # (L, H, 4H)
    whh_s = (whh * gscale).astype(jnp.bfloat16)          # (L, H, 4H)
    bias_s = (bias * gscale).astype(jnp.float32)         # (L, 1, 4H)

    w_slab = jnp.concatenate(
        [wih_s.reshape(L * H, G), whh_s.reshape(L * H, G)], axis=0)  # (2LH, 4H) bf16

    lanes = max(L * G, 128)
    rows = F + 3 + L * O
    rows_p = ((rows + 7) // 8) * 8
    p_slab = jnp.zeros((rows_p, lanes), jnp.float32)
    p_slab = p_slab.at[0:F, 0:H].set(w1.astype(jnp.float32))
    p_slab = p_slab.at[F, 0:H].set(b1.reshape(H).astype(jnp.float32))
    p_slab = p_slab.at[F + 1, 0:L * G].set(bias_s.reshape(L * G))
    w2_rows = jnp.transpose(w2.reshape(O, L, H), (1, 0, 2)).reshape(L * O, H)
    p_slab = p_slab.at[F + 2:F + 2 + L * O, 0:H].set(w2_rows.astype(jnp.float32))
    p_slab = p_slab.at[F + 2 + L * O, 0:O].set(b2.reshape(O).astype(jnp.float32))
    return w_slab, p_slab


def lstm_model_forward(x, w_slab, p_slab, *, output_size=1):
    """x: (B, S, F) batch-first, like the PyTorch module. Returns (B,) == predictions[:, -1]."""
    B, S, F = x.shape
    Bp = ((B + 7) // 8) * 8                     # pad batch to a full sublane tile
    if Bp != B:
        x = jnp.concatenate([x, jnp.zeros((Bp - B, S, F), x.dtype)], axis=0)
    # Time-major, flattened over (S, Bp): per-step slices are sublane-aligned.
    xt = jnp.transpose(x, (1, 0, 2)).reshape(S * Bp, F).astype(jnp.float32)

    out = pl.pallas_call(
        lstm_model_kernel,
        out_shape=jax.ShapeDtypeStruct((Bp, output_size), jnp.float32),
        in_specs=[pl.BlockSpec(memory_space=pltpu.MemorySpace.VMEM)] * 3,
        out_specs=pl.BlockSpec(memory_space=pltpu.MemorySpace.VMEM),
    )(xt, w_slab, p_slab)
    return out[:B, -1]


def lstm_model_reference(x, params):
    """Pure-JAX f32 reference of the PyTorch module (eval mode)."""
    w1, b1, wih, whh, bias, w2, b2 = params
    B, S, F = x.shape
    L, H = wih.shape[0], wih.shape[1]
    xh = jnp.maximum(x.reshape(B * S, F) @ w1 + b1, 0.0).reshape(B, S, H)
    h = [jnp.zeros((B, H), jnp.float32) for _ in range(L)]
    c = [jnp.zeros((B, H), jnp.float32) for _ in range(L)]
    for t in range(S):
        inp = xh[:, t, :]
        for l in range(L):
            g = inp @ wih[l] + h[l] @ whh[l] + bias[l]
            i = jax.nn.sigmoid(g[:, 0:H])
            f = jax.nn.sigmoid(g[:, H:2 * H])
            gg = jnp.tanh(g[:, 2 * H:3 * H])
            o = jax.nn.sigmoid(g[:, 3 * H:4 * H])
            c[l] = f * c[l] + i * gg
            h[l] = o * jnp.tanh(c[l])
            inp = h[l]
    hn = jnp.concatenate(h, axis=-1)            # == h_n.permute(1,0,2).reshape(B,-1)
    pred = hn @ w2.T + b2
    return pred[:, -1]


def init_params(key, input_size=1, hidden=32, num_layers=2, output_size=1):
    """Deterministic synthetic init mirroring the module's shapes / init_weights()."""
    ks = jax.random.split(key, 6)
    H, L, O = hidden, num_layers, output_size

    lim1 = 1.0 / jnp.sqrt(jnp.float32(input_size))
    w1 = jax.random.uniform(ks[0], (input_size, H), jnp.float32, -lim1, lim1)
    b1 = jax.random.uniform(ks[1], (1, H), jnp.float32, -lim1, lim1)

    # LSTM: kaiming-normal W_ih, orthogonal W_hh, zero biases (init_weights()).
    wih = jax.random.normal(ks[2], (L, H, 4 * H), jnp.float32) * jnp.sqrt(2.0 / H)
    whh_raw = jax.random.normal(ks[3], (L, 4 * H, H), jnp.float32)
    whh = jnp.stack([jnp.linalg.qr(whh_raw[l])[0] for l in range(L)])   # (L, 4H, H)
    whh = jnp.transpose(whh, (0, 2, 1))                                  # stored (L, H, 4H)
    bias = jnp.zeros((L, 1, 4 * H), jnp.float32)                         # b_ih + b_hh

    lim2 = 1.0 / jnp.sqrt(jnp.float32(L * H))
    w2 = jax.random.uniform(ks[4], (O, L * H), jnp.float32, -lim2, lim2)
    b2 = jax.random.uniform(ks[5], (1, O), jnp.float32, -lim2, lim2)
    return (w1, b1, wih, whh, bias, w2, b2)


if __name__ == "__main__":
    key = jax.random.PRNGKey(0)
    pkey, xkey = jax.random.split(key)

    B, S, F = 2, 8, 1          # batch, sequence length, input_size
    H, L, O = 32, 2, 1         # hidden_layer_size, num_layers, output_size

    params = init_params(pkey, F, H, L, O)
    x = jax.random.normal(xkey, (B, S, F), jnp.float32)

    # One-time weight prep (outside the per-call jitted graph).
    w_slab, p_slab = prepare_params(params)

    fwd = jax.jit(functools.partial(lstm_model_forward, output_size=O))
    out = jax.block_until_ready(fwd(x, w_slab, p_slab))
    assert out.shape == (B,), out.shape

    ref = lstm_model_reference(x, params)
    assert bool(jnp.allclose(out, ref, rtol=5e-2, atol=5e-2)), (out, ref)
    print("KERNEL_OK")
</pallas_src>

<mosaic_0001>
module attributes {stable_mosaic.version = 11 : i64} {
  func.func @lstm_model_kernel(%arg0: memref<64x1xf32, #tpu.memory_space<vmem>>, %arg1: memref<128x128xbf16, #tpu.memory_space<vmem>>, %arg2: memref<8x256xf32, #tpu.memory_space<vmem>>, %arg3: memref<8x1xf32, #tpu.memory_space<vmem>>) attributes {dimension_semantics = [], scalar_prefetch = 0 : i64, scratch_operands = 0 : i64, tpu.core_type = #tpu.core_type<tc>} {
    %c0 = arith.constant 0 : index
    %c0_0 = arith.constant 0 : index
    %0 = vector.load %arg2[%c0, %c0_0] : memref<8x256xf32, #tpu.memory_space<vmem>>, vector<1x32xf32>
    %c1 = arith.constant 1 : index
    %c0_1 = arith.constant 0 : index
    %1 = vector.load %arg2[%c1, %c0_1] : memref<8x256xf32, #tpu.memory_space<vmem>>, vector<1x32xf32>
    %c2 = arith.constant 2 : index
    %c0_2 = arith.constant 0 : index
    %2 = vector.load %arg2[%c2, %c0_2] : memref<8x256xf32, #tpu.memory_space<vmem>>, vector<1x128xf32>
    %c0_3 = arith.constant 0 : index
    %c0_4 = arith.constant 0 : index
    %3 = vector.load %arg1[%c0_3, %c0_4] : memref<128x128xbf16, #tpu.memory_space<vmem>>, vector<32x128xbf16>
    %c32 = arith.constant 32 : index
    %c0_5 = arith.constant 0 : index
    %4 = vector.load %arg1[%c32, %c0_5] : memref<128x128xbf16, #tpu.memory_space<vmem>>, vector<32x128xbf16>
    %c64 = arith.constant 64 : index
    %c0_6 = arith.constant 0 : index
    %5 = vector.load %arg1[%c64, %c0_6] : memref<128x128xbf16, #tpu.memory_space<vmem>>, vector<32x128xbf16>
    %c96 = arith.constant 96 : index
    %c0_7 = arith.constant 0 : index
    %6 = vector.load %arg1[%c96, %c0_7] : memref<128x128xbf16, #tpu.memory_space<vmem>>, vector<32x128xbf16>
    %c2_8 = arith.constant 2 : index
    %c128 = arith.constant 128 : index
    %7 = vector.load %arg2[%c2_8, %c128] : memref<8x256xf32, #tpu.memory_space<vmem>>, vector<1x128xf32>
    %8 = vector.shape_cast %7 : vector<1x128xf32> to vector<1x128xf32>
    %9 = vector.broadcast %8 : vector<1x128xf32> to vector<8x128xf32>
    %c0_9 = arith.constant 0 : index
    %c0_10 = arith.constant 0 : index
    %10 = vector.load %arg0[%c0_9, %c0_10] : memref<64x1xf32, #tpu.memory_space<vmem>>, vector<64x1xf32>
    %11 = vector.broadcast %10 : vector<64x1xf32> to vector<64x32xf32>
    %12 = vector.broadcast %0 : vector<1x32xf32> to vector<64x32xf32>
    %13 = arith.mulf %11, %12 : vector<64x32xf32>
    %14 = vector.broadcast %1 : vector<1x32xf32> to vector<64x32xf32>
    %15 = arith.addf %13, %14 : vector<64x32xf32>
    %cst = arith.constant 0.000000e+00 : f32
    %16 = vector.broadcast %cst : f32 to vector<64x32xf32>
    %17 = arith.maximumf %15, %16 : vector<64x32xf32>
    %18 = arith.truncf %17 : vector<64x32xf32> to vector<64x32xbf16>
    %cst_11 = arith.constant dense<0.000000e+00> : vector<64x128xf32>
    %19 = tpu.matmul %18, %3, %cst_11 {dimension_numbers = #tpu.dot_dimension_numbers<[1], [0], [0], [1], [0, 0, 1, 1], [], []>} : vector<64x32xbf16>, vector<32x128xbf16>, vector<64x128xf32> -> vector<64x128xf32>
    %20 = vector.broadcast %2 : vector<1x128xf32> to vector<64x128xf32>
    %21 = arith.addf %19, %20 : vector<64x128xf32>
    %cst_12 = arith.constant 0.000000e+00 : f32
    %22 = vector.broadcast %cst_12 : f32 to vector<8x32xf32>
    %23 = arith.truncf %22 : vector<8x32xf32> to vector<8x32xbf16>
    %cst_13 = arith.constant dense<0.000000e+00> : vector<8x128xf32>
    %24 = tpu.matmul %23, %5, %cst_13 {dimension_numbers = #tpu.dot_dimension_numbers<[1], [0], [0], [1], [0, 0, 1, 1], [], []>} : vector<8x32xbf16>, vector<32x128xbf16>, vector<8x128xf32> -> vector<8x128xf32>
    %25 = arith.truncf %22 : vector<8x32xf32> to vector<8x32xbf16>
    %cst_14 = arith.constant dense<0.000000e+00> : vector<8x128xf32>
    %26 = tpu.matmul %25, %6, %cst_14 {dimension_numbers = #tpu.dot_dimension_numbers<[1], [0], [0], [1], [0, 0, 1, 1], [], []>} : vector<8x32xbf16>, vector<32x128xbf16>, vector<8x128xf32> -> vector<8x128xf32>
    %27 = vector.extract_strided_slice %21 {offsets = [0, 0], sizes = [8, 128], strides = [1, 1]} : vector<64x128xf32> to vector<8x128xf32>
    %28 = arith.addf %27, %24 : vector<8x128xf32>
    %29 = arith.negf %28 : vector<8x128xf32>
    %30 = math.exp %29 : vector<8x128xf32>
    %cst_15 = arith.constant 1.000000e+00 : f32
    %31 = vector.broadcast %cst_15 : f32 to vector<8x128xf32>
    %32 = arith.addf %31, %30 : vector<8x128xf32>
    %33 = arith.divf %31, %32 : vector<8x128xf32>
    %34 = vector.extract_strided_slice %33 {offsets = [0, 0], sizes = [8, 32], strides = [1, 1]} : vector<8x128xf32> to vector<8x32xf32>
    %35 = vector.extract_strided_slice %33 {offsets = [0, 32], sizes = [8, 32], strides = [1, 1]} : vector<8x128xf32> to vector<8x32xf32>
    %36 = vector.extract_strided_slice %33 {offsets = [0, 64], sizes = [8, 32], strides = [1, 1]} : vector<8x128xf32> to vector<8x32xf32>
    %cst_16 = arith.constant 2.000000e+00 : f32
    %37 = vector.broadcast %cst_16 : f32 to vector<8x32xf32>
    %38 = arith.mulf %37, %36 : vector<8x32xf32>
    %cst_17 = arith.constant 1.000000e+00 : f32
    %39 = vector.broadcast %cst_17 : f32 to vector<8x32xf32>
    %40 = arith.subf %38, %39 : vector<8x32xf32>
    %41 = vector.extract_strided_slice %33 {offsets = [0, 96], sizes = [8, 32], strides = [1, 1]} : vector<8x128xf32> to vector<8x32xf32>
    %42 = arith.mulf %35, %22 : vector<8x32xf32>
    %43 = arith.mulf %34, %40 : vector<8x32xf32>
    %44 = arith.addf %42, %43 : vector<8x32xf32>
    %45 = math.tanh %44 : vector<8x32xf32>
    %46 = arith.mulf %41, %45 : vector<8x32xf32>
    %47 = arith.truncf %46 : vector<8x32xf32> to vector<8x32xbf16>
    %cst_18 = arith.constant dense<0.000000e+00> : vector<8x128xf32>
    %48 = tpu.matmul %47, %4, %cst_18 {dimension_numbers = #tpu.dot_dimension_numbers<[1], [0], [0], [1], [0, 0, 1, 1], [], []>} : vector<8x32xbf16>, vector<32x128xbf16>, vector<8x128xf32> -> vector<8x128xf32>
    %49 = arith.addf %26, %9 : vector<8x128xf32>
    %50 = arith.addf %48, %49 : vector<8x128xf32>
    %51 = arith.negf %50 : vector<8x128xf32>
    %52 = math.exp %51 : vector<8x128xf32>
    %cst_19 = arith.constant 1.000000e+00 : f32
    %53 = vector.broadcast %cst_19 : f32 to vector<8x128xf32>
    %54 = arith.addf %53, %52 : vector<8x128xf32>
    %55 = arith.divf %53, %54 : vector<8x128xf32>
    %56 = vector.extract_strided_slice %55 {offsets = [0, 0], sizes = [8, 32], strides = [1, 1]} : vector<8x128xf32> to vector<8x32xf32>
    %57 = vector.extract_strided_slice %55 {offsets = [0, 32], sizes = [8, 32], strides = [1, 1]} : vector<8x128xf32> to vector<8x32xf32>
    %58 = vector.extract_strided_slice %55 {offsets = [0, 64], sizes = [8, 32], strides = [1, 1]} : vector<8x128xf32> to vector<8x32xf32>
    %cst_20 = arith.constant 2.000000e+00 : f32
    %59 = vector.broadcast %cst_20 : f32 to vector<8x32xf32>
    %60 = arith.mulf %59, %58 : vector<8x32xf32>
    %cst_21 = arith.constant 1.000000e+00 : f32
    %61 = vector.broadcast %cst_21 : f32 to vector<8x32xf32>
    %62 = arith.subf %60, %61 : vector<8x32xf32>
    %63 = vector.extract_strided_slice %55 {offsets = [0, 96], sizes = [8, 32], strides = [1, 1]} : vector<8x128xf32> to vector<8x32xf32>
    %64 = arith.mulf %57, %22 : vector<8x32xf32>
    %65 = arith.mulf %56, %62 : vector<8x32xf32>
    %66 = arith.addf %64, %65 : vector<8x32xf32>
    %67 = math.tanh %66 : vector<8x32xf32>
    %68 = arith.mulf %63, %67 : vector<8x32xf32>
    %69 = arith.truncf %46 : vector<8x32xf32> to vector<8x32xbf16>
    %cst_22 = arith.constant dense<0.000000e+00> : vector<8x128xf32>
    %70 = tpu.matmul %69, %5, %cst_22 {dimension_numbers = #tpu.dot_dimension_numbers<[1], [0], [0], [1], [0, 0, 1, 1], [], []>} : vector<8x32xbf16>, vector<32x128xbf16>, vector<8x128xf32> -> vector<8x128xf32>
    %71 = arith.truncf %68 : vector<8x32xf32> to vector<8x32xbf16>
    %cst_23 = arith.constant dense<0.000000e+00> : vector<8x128xf32>
    %72 = tpu.matmul %71, %6, %cst_23 {dimension_numbers = #tpu.dot_dimension_numbers<[1], [0], [0], [1], [0, 0, 1, 1], [], []>} : vector<8x32xbf16>, vector<32x128xbf16>, vector<8x128xf32> -> vector<8x128xf32>
    %73 = vector.extract_strided_slice %21 {offsets = [8, 0], sizes = [8, 128], strides = [1, 1]} : vector<64x128xf32> to vector<8x128xf32>
    %74 = arith.addf %73, %70 : vector<8x128xf32>
    %75 = arith.negf %74 : vector<8x128xf32>
    %76 = math.exp %75 : vector<8x128xf32>
    %cst_24 = arith.constant 1.000000e+00 : f32
    %77 = vector.broadcast %cst_24 : f32 to vector<8x128xf32>
    %78 = arith.addf %77, %76 : vector<8x128xf32>
    %79 = arith.divf %77, %78 : vector<8x128xf32>
    %80 = vector.extract_strided_slice %79 {offsets = [0, 0], sizes = [8, 32], strides = [1, 1]} : vector<8x128xf32> to vector<8x32xf32>
    %81 = vector.extract_strided_slice %79 {offsets = [0, 32], sizes = [8, 32], strides = [1, 1]} : vector<8x128xf32> to vector<8x32xf32>
    %82 = vector.extract_strided_slice %79 {offsets = [0, 64], sizes = [8, 32], strides = [1, 1]} : vector<8x128xf32> to vector<8x32xf32>
    %cst_25 = arith.constant 2.000000e+00 : f32
    %83 = vector.broadcast %cst_25 : f32 to vector<8x32xf32>
    %84 = arith.mulf %83, %82 : vector<8x32xf32>
    %cst_26 = arith.constant 1.000000e+00 : f32
    %85 = vector.broadcast %cst_26 : f32 to vector<8x32xf32>
    %86 = arith.subf %84, %85 : vector<8x32xf32>
    %87 = vector.extract_strided_slice %79 {offsets = [0, 96], sizes = [8, 32], strides = [1, 1]} : vector<8x128xf32> to vector<8x32xf32>
    %88 = arith.mulf %81, %44 : vector<8x32xf32>
    %89 = arith.mulf %80, %86 : vector<8x32xf32>
    %90 = arith.addf %88, %89 : vector<8x32xf32>
    %91 = math.tanh %90 : vector<8x32xf32>
    %92 = arith.mulf %87, %91 : vector<8x32xf32>
    %93 = arith.truncf %92 : vector<8x32xf32> to vector<8x32xbf16>
    %cst_27 = arith.constant dense<0.000000e+00> : vector<8x128xf32>
    %94 = tpu.matmul %93, %4, %cst_27 {dimension_numbers = #tpu.dot_dimension_numbers<[1], [0], [0], [1], [0, 0, 1, 1], [], []>} : vector<8x32xbf16>, vector<32x128xbf16>, vector<8x128xf32> -> vector<8x128xf32>
    %95 = arith.addf %72, %9 : vector<8x128xf32>
    %96 = arith.addf %94, %95 : vector<8x128xf32>
    %97 = arith.negf %96 : vector<8x128xf32>
    %98 = math.exp %97 : vector<8x128xf32>
    %cst_28 = arith.constant 1.000000e+00 : f32
    %99 = vector.broadcast %cst_28 : f32 to vector<8x128xf32>
    %100 = arith.addf %99, %98 : vector<8x128xf32>
    %101 = arith.divf %99, %100 : vector<8x128xf32>
    %102 = vector.extract_strided_slice %101 {offsets = [0, 0], sizes = [8, 32], strides = [1, 1]} : vector<8x128xf32> to vector<8x32xf32>
    %103 = vector.extract_strided_slice %101 {offsets = [0, 32], sizes = [8, 32], strides = [1, 1]} : vector<8x128xf32> to vector<8x32xf32>
    %104 = vector.extract_strided_slice %101 {offsets = [0, 64], sizes = [8, 32], strides = [1, 1]} : vector<8x128xf32> to vector<8x32xf32>
    %cst_29 = arith.constant 2.000000e+00 : f32
    %105 = vector.broadcast %cst_29 : f32 to vector<8x32xf32>
    %106 = arith.mulf %105, %104 : vector<8x32xf32>
    %cst_30 = arith.constant 1.000000e+00 : f32
    %107 = vector.broadcast %cst_30 : f32 to vector<8x32xf32>
    %108 = arith.subf %106, %107 : vector<8x32xf32>
    %109 = vector.extract_strided_slice %101 {offsets = [0, 96], sizes = [8, 32], strides = [1, 1]} : vector<8x128xf32> to vector<8x32xf32>
    %110 = arith.mulf %103, %66 : vector<8x32xf32>
    %111 = arith.mulf %102, %108 : vector<8x32xf32>
    %112 = arith.addf %110, %111 : vector<8x32xf32>
    %113 = math.tanh %112 : vector<8x32xf32>
    %114 = arith.mulf %109, %113 : vector<8x32xf32>
    %115 = arith.truncf %92 : vector<8x32xf32> to vector<8x32xbf16>
    %cst_31 = arith.constant dense<0.000000e+00> : vector<8x128xf32>
    %116 = tpu.matmul %115, %5, %cst_31 {dimension_numbers = #tpu.dot_dimension_numbers<[1], [0], [0], [1], [0, 0, 1, 1], [], []>} : vector<8x32xbf16>, vector<32x128xbf16>, vector<8x128xf32> -> vector<8x128xf32>
    %117 = arith.truncf %114 : vector<8x32xf32> to vector<8x32xbf16>
    %cst_32 = arith.constant dense<0.000000e+00> : vector<8x128xf32>
    %118 = tpu.matmul %117, %6, %cst_32 {dimension_numbers = #tpu.dot_dimension_numbers<[1], [0], [0], [1], [0, 0, 1, 1], [], []>} : vector<8x32xbf16>, vector<32x128xbf16>, vector<8x128xf32> -> vector<8x128xf32>
    %119 = vector.extract_strided_slice %21 {offsets = [16, 0], sizes = [8, 128], strides = [1, 1]} : vector<64x128xf32> to vector<8x128xf32>
    %120 = arith.addf %119, %116 : vector<8x128xf32>
    %121 = arith.negf %120 : vector<8x128xf32>
    %122 = math.exp %121 : vector<8x128xf32>
    %cst_33 = arith.constant 1.000000e+00 : f32
    %123 = vector.broadcast %cst_33 : f32 to vector<8x128xf32>
    %124 = arith.addf %123, %122 : vector<8x128xf32>
    %125 = arith.divf %123, %124 : vector<8x128xf32>
    %126 = vector.extract_strided_slice %125 {offsets = [0, 0], sizes = [8, 32], strides = [1, 1]} : vector<8x128xf32> to vector<8x32xf32>
    %127 = vector.extract_strided_slice %125 {offsets = [0, 32], sizes = [8, 32], strides = [1, 1]} : vector<8x128xf32> to vector<8x32xf32>
    %128 = vector.extract_strided_slice %125 {offsets = [0, 64], sizes = [8, 32], strides = [1, 1]} : vector<8x128xf32> to vector<8x32xf32>
    %cst_34 = arith.constant 2.000000e+00 : f32
    %129 = vector.broadcast %cst_34 : f32 to vector<8x32xf32>
    %130 = arith.mulf %129, %128 : vector<8x32xf32>
    %cst_35 = arith.constant 1.000000e+00 : f32
    %131 = vector.broadcast %cst_35 : f32 to vector<8x32xf32>
    %132 = arith.subf %130, %131 : vector<8x32xf32>
    %133 = vector.extract_strided_slice %125 {offsets = [0, 96], sizes = [8, 32], strides = [1, 1]} : vector<8x128xf32> to vector<8x32xf32>
    %134 = arith.mulf %127, %90 : vector<8x32xf32>
    %135 = arith.mulf %126, %132 : vector<8x32xf32>
    %136 = arith.addf %134, %135 : vector<8x32xf32>
    %137 = math.tanh %136 : vector<8x32xf32>
    %138 = arith.mulf %133, %137 : vector<8x32xf32>
    %139 = arith.truncf %138 : vector<8x32xf32> to vector<8x32xbf16>
    %cst_36 = arith.constant dense<0.000000e+00> : vector<8x128xf32>
    %140 = tpu.matmul %139, %4, %cst_36 {dimension_numbers = #tpu.dot_dimension_numbers<[1], [0], [0], [1], [0, 0, 1, 1], [], []>} : vector<8x32xbf16>, vector<32x128xbf16>, vector<8x128xf32> -> vector<8x128xf32>
    %141 = arith.addf %118, %9 : vector<8x128xf32>
    %142 = arith.addf %140, %141 : vector<8x128xf32>
    %143 = arith.negf %142 : vector<8x128xf32>
    %144 = math.exp %143 : vector<8x128xf32>
    %cst_37 = arith.constant 1.000000e+00 : f32
    %145 = vector.broadcast %cst_37 : f32 to vector<8x128xf32>
    %146 = arith.addf %145, %144 : vector<8x128xf32>
    %147 = arith.divf %145, %146 : vector<8x128xf32>
    %148 = vector.extract_strided_slice %147 {offsets = [0, 0], sizes = [8, 32], strides = [1, 1]} : vector<8x128xf32> to vector<8x32xf32>
    %149 = vector.extract_strided_slice %147 {offsets = [0, 32], sizes = [8, 32], strides = [1, 1]} : vector<8x128xf32> to vector<8x32xf32>
    %150 = vector.extract_strided_slice %147 {offsets = [0, 64], sizes = [8, 32], strides = [1, 1]} : vector<8x128xf32> to vector<8x32xf32>
    %cst_38 = arith.constant 2.000000e+00 : f32
    %151 = vector.broadcast %cst_38 : f32 to vector<8x32xf32>
    %152 = arith.mulf %151, %150 : vector<8x32xf32>
    %cst_39 = arith.constant 1.000000e+00 : f32
    %153 = vector.broadcast %cst_39 : f32 to vector<8x32xf32>
    %154 = arith.subf %152, %153 : vector<8x32xf32>
    %155 = vector.extract_strided_slice %147 {offsets = [0, 96], sizes = [8, 32], strides = [1, 1]} : vector<8x128xf32> to vector<8x32xf32>
    %156 = arith.mulf %149, %112 : vector<8x32xf32>
    %157 = arith.mulf %148, %154 : vector<8x32xf32>
    %158 = arith.addf %156, %157 : vector<8x32xf32>
    %159 = math.tanh %158 : vector<8x32xf32>
    %160 = arith.mulf %155, %159 : vector<8x32xf32>
    %161 = arith.truncf %138 : vector<8x32xf32> to vector<8x32xbf16>
    %cst_40 = arith.constant dense<0.000000e+00> : vector<8x128xf32>
    %162 = tpu.matmul %161, %5, %cst_40 {dimension_numbers = #tpu.dot_dimension_numbers<[1], [0], [0], [1], [0, 0, 1, 1], [], []>} : vector<8x32xbf16>, vector<32x128xbf16>, vector<8x128xf32> -> vector<8x128xf32>
    %163 = arith.truncf %160 : vector<8x32xf32> to vector<8x32xbf16>
    %cst_41 = arith.constant dense<0.000000e+00> : vector<8x128xf32>
    %164 = tpu.matmul %163, %6, %cst_41 {dimension_numbers = #tpu.dot_dimension_numbers<[1], [0], [0], [1], [0, 0, 1, 1], [], []>} : vector<8x32xbf16>, vector<32x128xbf16>, vector<8x128xf32> -> vector<8x128xf32>
    %165 = vector.extract_strided_slice %21 {offsets = [24, 0], sizes = [8, 128], strides = [1, 1]} : vector<64x128xf32> to vector<8x128xf32>
    %166 = arith.addf %165, %162 : vector<8x128xf32>
    %167 = arith.negf %166 : vector<8x128xf32>
    %168 = math.exp %167 : vector<8x128xf32>
    %cst_42 = arith.constant 1.000000e+00 : f32
    %169 = vector.broadcast %cst_42 : f32 to vector<8x128xf32>
    %170 = arith.addf %169, %168 : vector<8x128xf32>
    %171 = arith.divf %169, %170 : vector<8x128xf32>
    %172 = vector.extract_strided_slice %171 {offsets = [0, 0], sizes = [8, 32], strides = [1, 1]} : vector<8x128xf32> to vector<8x32xf32>
    %173 = vector.extract_strided_slice %171 {offsets = [0, 32], sizes = [8, 32], strides = [1, 1]} : vector<8x128xf32> to vector<8x32xf32>
    %174 = vector.extract_strided_slice %171 {offsets = [0, 64], sizes = [8, 32], strides = [1, 1]} : vector<8x128xf32> to vector<8x32xf32>
    %cst_43 = arith.constant 2.000000e+00 : f32
    %175 = vector.broadcast %cst_43 : f32 to vector<8x32xf32>
    %176 = arith.mulf %175, %174 : vector<8x32xf32>
    %cst_44 = arith.constant 1.000000e+00 : f32
    %177 = vector.broadcast %cst_44 : f32 to vector<8x32xf32>
    %178 = arith.subf %176, %177 : vector<8x32xf32>
    %179 = vector.extract_strided_slice %171 {offsets = [0, 96], sizes = [8, 32], strides = [1, 1]} : vector<8x128xf32> to vector<8x32xf32>
    %180 = arith.mulf %173, %136 : vector<8x32xf32>
    %181 = arith.mulf %172, %178 : vector<8x32xf32>
    %182 = arith.addf %180, %181 : vector<8x32xf32>
    %183 = math.tanh %182 : vector<8x32xf32>
    %184 = arith.mulf %179, %183 : vector<8x32xf32>
    %185 = arith.truncf %184 : vector<8x32xf32> to vector<8x32xbf16>
    %cst_45 = arith.constant dense<0.000000e+00> : vector<8x128xf32>
    %186 = tpu.matmul %185, %4, %cst_45 {dimension_numbers = #tpu.dot_dimension_numbers<[1], [0], [0], [1], [0, 0, 1, 1], [], []>} : vector<8x32xbf16>, vector<32x128xbf16>, vector<8x128xf32> -> vector<8x128xf32>
    %187 = arith.addf %164, %9 : vector<8x128xf32>
    %188 = arith.addf %186, %187 : vector<8x128xf32>
    %189 = arith.negf %188 : vector<8x128xf32>
    %190 = math.exp %189 : vector<8x128xf32>
    %cst_46 = arith.constant 1.000000e+00 : f32
    %191 = vector.broadcast %cst_46 : f32 to vector<8x128xf32>
    %192 = arith.addf %191, %190 : vector<8x128xf32>
    %193 = arith.divf %191, %192 : vector<8x128xf32>
    %194 = vector.extract_strided_slice %193 {offsets = [0, 0], sizes = [8, 32], strides = [1, 1]} : vector<8x128xf32> to vector<8x32xf32>
    %195 = vector.extract_strided_slice %193 {offsets = [0, 32], sizes = [8, 32], strides = [1, 1]} : vector<8x128xf32> to vector<8x32xf32>
    %196 = vector.extract_strided_slice %193 {offsets = [0, 64], sizes = [8, 32], strides = [1, 1]} : vector<8x128xf32> to vector<8x32xf32>
    %cst_47 = arith.constant 2.000000e+00 : f32
    %197 = vector.broadcast %cst_47 : f32 to vector<8x32xf32>
    %198 = arith.mulf %197, %196 : vector<8x32xf32>
    %cst_48 = arith.constant 1.000000e+00 : f32
    %199 = vector.broadcast %cst_48 : f32 to vector<8x32xf32>
    %200 = arith.subf %198, %199 : vector<8x32xf32>
    %201 = vector.extract_strided_slice %193 {offsets = [0, 96], sizes = [8, 32], strides = [1, 1]} : vector<8x128xf32> to vector<8x32xf32>
    %202 = arith.mulf %195, %158 : vector<8x32xf32>
    %203 = arith.mulf %194, %200 : vector<8x32xf32>
    %204 = arith.addf %202, %203 : vector<8x32xf32>
    %205 = math.tanh %204 : vector<8x32xf32>
    %206 = arith.mulf %201, %205 : vector<8x32xf32>
    %207 = arith.truncf %184 : vector<8x32xf32> to vector<8x32xbf16>
    %cst_49 = arith.constant dense<0.000000e+00> : vector<8x128xf32>
    %208 = tpu.matmul %207, %5, %cst_49 {dimension_numbers = #tpu.dot_dimension_numbers<[1], [0], [0], [1], [0, 0, 1, 1], [], []>} : vector<8x32xbf16>, vector<32x128xbf16>, vector<8x128xf32> -> vector<8x128xf32>
    %209 = arith.truncf %206 : vector<8x32xf32> to vector<8x32xbf16>
    %cst_50 = arith.constant dense<0.000000e+00> : vector<8x128xf32>
    %210 = tpu.matmul %209, %6, %cst_50 {dimension_numbers = #tpu.dot_dimension_numbers<[1], [0], [0], [1], [0, 0, 1, 1], [], []>} : vector<8x32xbf16>, vector<32x128xbf16>, vector<8x128xf32> -> vector<8x128xf32>
    %211 = vector.extract_strided_slice %21 {offsets = [32, 0], sizes = [8, 128], strides = [1, 1]} : vector<64x128xf32> to vector<8x128xf32>
    %212 = arith.addf %211, %208 : vector<8x128xf32>
    %213 = arith.negf %212 : vector<8x128xf32>
    %214 = math.exp %213 : vector<8x128xf32>
    %cst_51 = arith.constant 1.000000e+00 : f32
    %215 = vector.broadcast %cst_51 : f32 to vector<8x128xf32>
    %216 = arith.addf %215, %214 : vector<8x128xf32>
    %217 = arith.divf %215, %216 : vector<8x128xf32>
    %218 = vector.extract_strided_slice %217 {offsets = [0, 0], sizes = [8, 32], strides = [1, 1]} : vector<8x128xf32> to vector<8x32xf32>
    %219 = vector.extract_strided_slice %217 {offsets = [0, 32], sizes = [8, 32], strides = [1, 1]} : vector<8x128xf32> to vector<8x32xf32>
    %220 = vector.extract_strided_slice %217 {offsets = [0, 64], sizes = [8, 32], strides = [1, 1]} : vector<8x128xf32> to vector<8x32xf32>
    %cst_52 = arith.constant 2.000000e+00 : f32
    %221 = vector.broadcast %cst_52 : f32 to vector<8x32xf32>
    %222 = arith.mulf %221, %220 : vector<8x32xf32>
    %cst_53 = arith.constant 1.000000e+00 : f32
    %223 = vector.broadcast %cst_53 : f32 to vector<8x32xf32>
    %224 = arith.subf %222, %223 : vector<8x32xf32>
    %225 = vector.extract_strided_slice %217 {offsets = [0, 96], sizes = [8, 32], strides = [1, 1]} : vector<8x128xf32> to vector<8x32xf32>
    %226 = arith.mulf %219, %182 : vector<8x32xf32>
    %227 = arith.mulf %218, %224 : vector<8x32xf32>
    %228 = arith.addf %226, %227 : vector<8x32xf32>
    %229 = math.tanh %228 : vector<8x32xf32>
    %230 = arith.mulf %225, %229 : vector<8x32xf32>
    %231 = arith.truncf %230 : vector<8x32xf32> to vector<8x32xbf16>
    %cst_54 = arith.constant dense<0.000000e+00> : vector<8x128xf32>
    %232 = tpu.matmul %231, %4, %cst_54 {dimension_numbers = #tpu.dot_dimension_numbers<[1], [0], [0], [1], [0, 0, 1, 1], [], []>} : vector<8x32xbf16>, vector<32x128xbf16>, vector<8x128xf32> -> vector<8x128xf32>
    %233 = arith.addf %210, %9 : vector<8x128xf32>
    %234 = arith.addf %232, %233 : vector<8x128xf32>
    %235 = arith.negf %234 : vector<8x128xf32>
    %236 = math.exp %235 : vector<8x128xf32>
    %cst_55 = arith.constant 1.000000e+00 : f32
    %237 = vector.broadcast %cst_55 : f32 to vector<8x128xf32>
    %238 = arith.addf %237, %236 : vector<8x128xf32>
    %239 = arith.divf %237, %238 : vector<8x128xf32>
    %240 = vector.extract_strided_slice %239 {offsets = [0, 0], sizes = [8, 32], strides = [1, 1]} : vector<8x128xf32> to vector<8x32xf32>
    %241 = vector.extract_strided_slice %239 {offsets = [0, 32], sizes = [8, 32], strides = [1, 1]} : vector<8x128xf32> to vector<8x32xf32>
    %242 = vector.extract_strided_slice %239 {offsets = [0, 64], sizes = [8, 32], strides = [1, 1]} : vector<8x128xf32> to vector<8x32xf32>
    %cst_56 = arith.constant 2.000000e+00 : f32
    %243 = vector.broadcast %cst_56 : f32 to vector<8x32xf32>
    %244 = arith.mulf %243, %242 : vector<8x32xf32>
    %cst_57 = arith.constant 1.000000e+00 : f32
    %245 = vector.broadcast %cst_57 : f32 to vector<8x32xf32>
    %246 = arith.subf %244, %245 : vector<8x32xf32>
    %247 = vector.extract_strided_slice %239 {offsets = [0, 96], sizes = [8, 32], strides = [1, 1]} : vector<8x128xf32> to vector<8x32xf32>
    %248 = arith.mulf %241, %204 : vector<8x32xf32>
    %249 = arith.mulf %240, %246 : vector<8x32xf32>
    %250 = arith.addf %248, %249 : vector<8x32xf32>
    %251 = math.tanh %250 : vector<8x32xf32>
    %252 = arith.mulf %247, %251 : vector<8x32xf32>
    %253 = arith.truncf %230 : vector<8x32xf32> to vector<8x32xbf16>
    %cst_58 = arith.constant dense<0.000000e+00> : vector<8x128xf32>
    %254 = tpu.matmul %253, %5, %cst_58 {dimension_numbers = #tpu.dot_dimension_numbers<[1], [0], [0], [1], [0, 0, 1, 1], [], []>} : vector<8x32xbf16>, vector<32x128xbf16>, vector<8x128xf32> -> vector<8x128xf32>
    %255 = arith.truncf %252 : vector<8x32xf32> to vector<8x32xbf16>
    %cst_59 = arith.constant dense<0.000000e+00> : vector<8x128xf32>
    %256 = tpu.matmul %255, %6, %cst_59 {dimension_numbers = #tpu.dot_dimension_numbers<[1], [0], [0], [1], [0, 0, 1, 1], [], []>} : vector<8x32xbf16>, vector<32x128xbf16>, vector<8x128xf32> -> vector<8x128xf32>
    %257 = vector.extract_strided_slice %21 {offsets = [40, 0], sizes = [8, 128], strides = [1, 1]} : vector<64x128xf32> to vector<8x128xf32>
    %258 = arith.addf %257, %254 : vector<8x128xf32>
    %259 = arith.negf %258 : vector<8x128xf32>
    %260 = math.exp %259 : vector<8x128xf32>
    %cst_60 = arith.constant 1.000000e+00 : f32
    %261 = vector.broadcast %cst_60 : f32 to vector<8x128xf32>
    %262 = arith.addf %261, %260 : vector<8x128xf32>
    %263 = arith.divf %261, %262 : vector<8x128xf32>
    %264 = vector.extract_strided_slice %263 {offsets = [0, 0], sizes = [8, 32], strides = [1, 1]} : vector<8x128xf32> to vector<8x32xf32>
    %265 = vector.extract_strided_slice %263 {offsets = [0, 32], sizes = [8, 32], strides = [1, 1]} : vector<8x128xf32> to vector<8x32xf32>
    %266 = vector.extract_strided_slice %263 {offsets = [0, 64], sizes = [8, 32], strides = [1, 1]} : vector<8x128xf32> to vector<8x32xf32>
    %cst_61 = arith.constant 2.000000e+00 : f32
    %267 = vector.broadcast %cst_61 : f32 to vector<8x32xf32>
    %268 = arith.mulf %267, %266 : vector<8x32xf32>
    %cst_62 = arith.constant 1.000000e+00 : f32
    %269 = vector.broadcast %cst_62 : f32 to vector<8x32xf32>
    %270 = arith.subf %268, %269 : vector<8x32xf32>
    %271 = vector.extract_strided_slice %263 {offsets = [0, 96], sizes = [8, 32], strides = [1, 1]} : vector<8x128xf32> to vector<8x32xf32>
    %272 = arith.mulf %265, %228 : vector<8x32xf32>
    %273 = arith.mulf %264, %270 : vector<8x32xf32>
    %274 = arith.addf %272, %273 : vector<8x32xf32>
    %275 = math.tanh %274 : vector<8x32xf32>
    %276 = arith.mulf %271, %275 : vector<8x32xf32>
    %277 = arith.truncf %276 : vector<8x32xf32> to vector<8x32xbf16>
    %cst_63 = arith.constant dense<0.000000e+00> : vector<8x128xf32>
    %278 = tpu.matmul %277, %4, %cst_63 {dimension_numbers = #tpu.dot_dimension_numbers<[1], [0], [0], [1], [0, 0, 1, 1], [], []>} : vector<8x32xbf16>, vector<32x128xbf16>, vector<8x128xf32> -> vector<8x128xf32>
    %279 = arith.addf %256, %9 : vector<8x128xf32>
    %280 = arith.addf %278, %279 : vector<8x128xf32>
    %281 = arith.negf %280 : vector<8x128xf32>
    %282 = math.exp %281 : vector<8x128xf32>
    %cst_64 = arith.constant 1.000000e+00 : f32
    %283 = vector.broadcast %cst_64 : f32 to vector<8x128xf32>
    %284 = arith.addf %283, %282 : vector<8x128xf32>
    %285 = arith.divf %283, %284 : vector<8x128xf32>
    %286 = vector.extract_strided_slice %285 {offsets = [0, 0], sizes = [8, 32], strides = [1, 1]} : vector<8x128xf32> to vector<8x32xf32>
    %287 = vector.extract_strided_slice %285 {offsets = [0, 32], sizes = [8, 32], strides = [1, 1]} : vector<8x128xf32> to vector<8x32xf32>
    %288 = vector.extract_strided_slice %285 {offsets = [0, 64], sizes = [8, 32], strides = [1, 1]} : vector<8x128xf32> to vector<8x32xf32>
    %cst_65 = arith.constant 2.000000e+00 : f32
    %289 = vector.broadcast %cst_65 : f32 to vector<8x32xf32>
    %290 = arith.mulf %289, %288 : vector<8x32xf32>
    %cst_66 = arith.constant 1.000000e+00 : f32
    %291 = vector.broadcast %cst_66 : f32 to vector<8x32xf32>
    %292 = arith.subf %290, %291 : vector<8x32xf32>
    %293 = vector.extract_strided_slice %285 {offsets = [0, 96], sizes = [8, 32], strides = [1, 1]} : vector<8x128xf32> to vector<8x32xf32>
    %294 = arith.mulf %287, %250 : vector<8x32xf32>
    %295 = arith.mulf %286, %292 : vector<8x32xf32>
    %296 = arith.addf %294, %295 : vector<8x32xf32>
    %297 = math.tanh %296 : vector<8x32xf32>
    %298 = arith.mulf %293, %297 : vector<8x32xf32>
    %299 = arith.truncf %276 : vector<8x32xf32> to vector<8x32xbf16>
    %cst_67 = arith.constant dense<0.000000e+00> : vector<8x128xf32>
    %300 = tpu.matmul %299, %5, %cst_67 {dimension_numbers = #tpu.dot_dimension_numbers<[1], [0], [0], [1], [0, 0, 1, 1], [], []>} : vector<8x32xbf16>, vector<32x128xbf16>, vector<8x128xf32> -> vector<8x128xf32>
    %301 = arith.truncf %298 : vector<8x32xf32> to vector<8x32xbf16>
    %cst_68 = arith.constant dense<0.000000e+00> : vector<8x128xf32>
    %302 = tpu.matmul %301, %6, %cst_68 {dimension_numbers = #tpu.dot_dimension_numbers<[1], [0], [0], [1], [0, 0, 1, 1], [], []>} : vector<8x32xbf16>, vector<32x128xbf16>, vector<8x128xf32> -> vector<8x128xf32>
    %303 = vector.extract_strided_slice %21 {offsets = [48, 0], sizes = [8, 128], strides = [1, 1]} : vector<64x128xf32> to vector<8x128xf32>
    %304 = arith.addf %303, %300 : vector<8x128xf32>
    %305 = arith.negf %304 : vector<8x128xf32>
    %306 = math.exp %305 : vector<8x128xf32>
    %cst_69 = arith.constant 1.000000e+00 : f32
    %307 = vector.broadcast %cst_69 : f32 to vector<8x128xf32>
    %308 = arith.addf %307, %306 : vector<8x128xf32>
    %309 = arith.divf %307, %308 : vector<8x128xf32>
    %310 = vector.extract_strided_slice %309 {offsets = [0, 0], sizes = [8, 32], strides = [1, 1]} : vector<8x128xf32> to vector<8x32xf32>
    %311 = vector.extract_strided_slice %309 {offsets = [0, 32], sizes = [8, 32], strides = [1, 1]} : vector<8x128xf32> to vector<8x32xf32>
    %312 = vector.extract_strided_slice %309 {offsets = [0, 64], sizes = [8, 32], strides = [1, 1]} : vector<8x128xf32> to vector<8x32xf32>
    %cst_70 = arith.constant 2.000000e+00 : f32
    %313 = vector.broadcast %cst_70 : f32 to vector<8x32xf32>
    %314 = arith.mulf %313, %312 : vector<8x32xf32>
    %cst_71 = arith.constant 1.000000e+00 : f32
    %315 = vector.broadcast %cst_71 : f32 to vector<8x32xf32>
    %316 = arith.subf %314, %315 : vector<8x32xf32>
    %317 = vector.extract_strided_slice %309 {offsets = [0, 96], sizes = [8, 32], strides = [1, 1]} : vector<8x128xf32> to vector<8x32xf32>
    %318 = arith.mulf %311, %274 : vector<8x32xf32>
    %319 = arith.mulf %310, %316 : vector<8x32xf32>
    %320 = arith.addf %318, %319 : vector<8x32xf32>
    %321 = math.tanh %320 : vector<8x32xf32>
    %322 = arith.mulf %317, %321 : vector<8x32xf32>
    %323 = arith.truncf %322 : vector<8x32xf32> to vector<8x32xbf16>
    %cst_72 = arith.constant dense<0.000000e+00> : vector<8x128xf32>
    %324 = tpu.matmul %323, %4, %cst_72 {dimension_numbers = #tpu.dot_dimension_numbers<[1], [0], [0], [1], [0, 0, 1, 1], [], []>} : vector<8x32xbf16>, vector<32x128xbf16>, vector<8x128xf32> -> vector<8x128xf32>
    %325 = arith.addf %302, %9 : vector<8x128xf32>
    %326 = arith.addf %324, %325 : vector<8x128xf32>
    %327 = arith.negf %326 : vector<8x128xf32>
    %328 = math.exp %327 : vector<8x128xf32>
    %cst_73 = arith.constant 1.000000e+00 : f32
    %329 = vector.broadcast %cst_73 : f32 to vector<8x128xf32>
    %330 = arith.addf %329, %328 : vector<8x128xf32>
    %331 = arith.divf %329, %330 : vector<8x128xf32>
    %332 = vector.extract_strided_slice %331 {offsets = [0, 0], sizes = [8, 32], strides = [1, 1]} : vector<8x128xf32> to vector<8x32xf32>
    %333 = vector.extract_strided_slice %331 {offsets = [0, 32], sizes = [8, 32], strides = [1, 1]} : vector<8x128xf32> to vector<8x32xf32>
    %334 = vector.extract_strided_slice %331 {offsets = [0, 64], sizes = [8, 32], strides = [1, 1]} : vector<8x128xf32> to vector<8x32xf32>
    %cst_74 = arith.constant 2.000000e+00 : f32
    %335 = vector.broadcast %cst_74 : f32 to vector<8x32xf32>
    %336 = arith.mulf %335, %334 : vector<8x32xf32>
    %cst_75 = arith.constant 1.000000e+00 : f32
    %337 = vector.broadcast %cst_75 : f32 to vector<8x32xf32>
    %338 = arith.subf %336, %337 : vector<8x32xf32>
    %339 = vector.extract_strided_slice %331 {offsets = [0, 96], sizes = [8, 32], strides = [1, 1]} : vector<8x128xf32> to vector<8x32xf32>
    %340 = arith.mulf %333, %296 : vector<8x32xf32>
    %341 = arith.mulf %332, %338 : vector<8x32xf32>
    %342 = arith.addf %340, %341 : vector<8x32xf32>
    %343 = math.tanh %342 : vector<8x32xf32>
    %344 = arith.mulf %339, %343 : vector<8x32xf32>
    %345 = arith.truncf %322 : vector<8x32xf32> to vector<8x32xbf16>
    %cst_76 = arith.constant dense<0.000000e+00> : vector<8x128xf32>
    %346 = tpu.matmul %345, %5, %cst_76 {dimension_numbers = #tpu.dot_dimension_numbers<[1], [0], [0], [1], [0, 0, 1, 1], [], []>} : vector<8x32xbf16>, vector<32x128xbf16>, vector<8x128xf32> -> vector<8x128xf32>
    %347 = arith.truncf %344 : vector<8x32xf32> to vector<8x32xbf16>
    %cst_77 = arith.constant dense<0.000000e+00> : vector<8x128xf32>
    %348 = tpu.matmul %347, %6, %cst_77 {dimension_numbers = #tpu.dot_dimension_numbers<[1], [0], [0], [1], [0, 0, 1, 1], [], []>} : vector<8x32xbf16>, vector<32x128xbf16>, vector<8x128xf32> -> vector<8x128xf32>
    %349 = vector.extract_strided_slice %21 {offsets = [56, 0], sizes = [8, 128], strides = [1, 1]} : vector<64x128xf32> to vector<8x128xf32>
    %350 = arith.addf %349, %346 : vector<8x128xf32>
    %351 = arith.negf %350 : vector<8x128xf32>
    %352 = math.exp %351 : vector<8x128xf32>
    %cst_78 = arith.constant 1.000000e+00 : f32
    %353 = vector.broadcast %cst_78 : f32 to vector<8x128xf32>
    %354 = arith.addf %353, %352 : vector<8x128xf32>
    %355 = arith.divf %353, %354 : vector<8x128xf32>
    %356 = vector.extract_strided_slice %355 {offsets = [0, 0], sizes = [8, 32], strides = [1, 1]} : vector<8x128xf32> to vector<8x32xf32>
    %357 = vector.extract_strided_slice %355 {offsets = [0, 32], sizes = [8, 32], strides = [1, 1]} : vector<8x128xf32> to vector<8x32xf32>
    %358 = vector.extract_strided_slice %355 {offsets = [0, 64], sizes = [8, 32], strides = [1, 1]} : vector<8x128xf32> to vector<8x32xf32>
    %cst_79 = arith.constant 2.000000e+00 : f32
    %359 = vector.broadcast %cst_79 : f32 to vector<8x32xf32>
    %360 = arith.mulf %359, %358 : vector<8x32xf32>
    %cst_80 = arith.constant 1.000000e+00 : f32
    %361 = vector.broadcast %cst_80 : f32 to vector<8x32xf32>
    %362 = arith.subf %360, %361 : vector<8x32xf32>
    %363 = vector.extract_strided_slice %355 {offsets = [0, 96], sizes = [8, 32], strides = [1, 1]} : vector<8x128xf32> to vector<8x32xf32>
    %364 = arith.mulf %357, %320 : vector<8x32xf32>
    %365 = arith.mulf %356, %362 : vector<8x32xf32>
    %366 = arith.addf %364, %365 : vector<8x32xf32>
    %367 = math.tanh %366 : vector<8x32xf32>
    %368 = arith.mulf %363, %367 : vector<8x32xf32>
    %369 = arith.truncf %368 : vector<8x32xf32> to vector<8x32xbf16>
    %cst_81 = arith.constant dense<0.000000e+00> : vector<8x128xf32>
    %370 = tpu.matmul %369, %4, %cst_81 {dimension_numbers = #tpu.dot_dimension_numbers<[1], [0], [0], [1], [0, 0, 1, 1], [], []>} : vector<8x32xbf16>, vector<32x128xbf16>, vector<8x128xf32> -> vector<8x128xf32>
    %371 = arith.addf %348, %9 : vector<8x128xf32>
    %372 = arith.addf %370, %371 : vector<8x128xf32>
    %373 = arith.negf %372 : vector<8x128xf32>
    %374 = math.exp %373 : vector<8x128xf32>
    %cst_82 = arith.constant 1.000000e+00 : f32
    %375 = vector.broadcast %cst_82 : f32 to vector<8x128xf32>
    %376 = arith.addf %375, %374 : vector<8x128xf32>
    %377 = arith.divf %375, %376 : vector<8x128xf32>
    %378 = vector.extract_strided_slice %377 {offsets = [0, 0], sizes = [8, 32], strides = [1, 1]} : vector<8x128xf32> to vector<8x32xf32>
    %379 = vector.extract_strided_slice %377 {offsets = [0, 32], sizes = [8, 32], strides = [1, 1]} : vector<8x128xf32> to vector<8x32xf32>
    %380 = vector.extract_strided_slice %377 {offsets = [0, 64], sizes = [8, 32], strides = [1, 1]} : vector<8x128xf32> to vector<8x32xf32>
    %cst_83 = arith.constant 2.000000e+00 : f32
    %381 = vector.broadcast %cst_83 : f32 to vector<8x32xf32>
    %382 = arith.mulf %381, %380 : vector<8x32xf32>
    %cst_84 = arith.constant 1.000000e+00 : f32
    %383 = vector.broadcast %cst_84 : f32 to vector<8x32xf32>
    %384 = arith.subf %382, %383 : vector<8x32xf32>
    %385 = vector.extract_strided_slice %377 {offsets = [0, 96], sizes = [8, 32], strides = [1, 1]} : vector<8x128xf32> to vector<8x32xf32>
    %386 = arith.mulf %379, %342 : vector<8x32xf32>
    %387 = arith.mulf %378, %384 : vector<8x32xf32>
    %388 = arith.addf %386, %387 : vector<8x32xf32>
    %389 = math.tanh %388 : vector<8x32xf32>
    %390 = arith.mulf %385, %389 : vector<8x32xf32>
    %c5 = arith.constant 5 : index
    %c0_85 = arith.constant 0 : index
    %391 = vector.load %arg2[%c5, %c0_85] : memref<8x256xf32, #tpu.memory_space<vmem>>, vector<1x1xf32>
    %392 = vector.shape_cast %391 : vector<1x1xf32> to vector<1x1xf32>
    %393 = vector.broadcast %392 : vector<1x1xf32> to vector<8x1xf32>
    %c3 = arith.constant 3 : index
    %c0_86 = arith.constant 0 : index
    %394 = vector.load %arg2[%c3, %c0_86] : memref<8x256xf32, #tpu.memory_space<vmem>>, vector<1x32xf32>
    %395 = vector.broadcast %394 : vector<1x32xf32> to vector<8x32xf32>
    %396 = arith.mulf %368, %395 : vector<8x32xf32>
    %cst_87 = arith.constant dense<0.000000e+00> : vector<8xf32>
    %397 = vector.multi_reduction <add>, %396, %cst_87 [1] : vector<8x32xf32> to vector<8xf32>
    %398 = vector.shape_cast %397 : vector<8xf32> to vector<8x1xf32>
    %399 = arith.addf %393, %398 : vector<8x1xf32>
    %c4 = arith.constant 4 : index
    %c0_88 = arith.constant 0 : index
    %400 = vector.load %arg2[%c4, %c0_88] : memref<8x256xf32, #tpu.memory_space<vmem>>, vector<1x32xf32>
    %401 = vector.broadcast %400 : vector<1x32xf32> to vector<8x32xf32>
    %402 = arith.mulf %390, %401 : vector<8x32xf32>
    %cst_89 = arith.constant dense<0.000000e+00> : vector<8xf32>
    %403 = vector.multi_reduction <add>, %402, %cst_89 [1] : vector<8x32xf32> to vector<8xf32>
    %404 = vector.shape_cast %403 : vector<8xf32> to vector<8x1xf32>
    %405 = arith.addf %399, %404 : vector<8x1xf32>
    %c0_90 = arith.constant 0 : index
    %c0_91 = arith.constant 0 : index
    %406 = vector.load %arg3[%c0_90, %c0_91] : memref<8x1xf32, #tpu.memory_space<vmem>>, vector<8x1xf32>
    tpu.vector_store %arg3[%c0_90, %c0_91], %405 {strides = array<i32>} : memref<8x1xf32, #tpu.memory_space<vmem>>, vector<8x1xf32>,
    return
  }
}

</mosaic_0001>

<llo_original>
// kernel: lstm_model_forward.1
$region0: #{lstm_model_forward.1}
  #allocation0 [shape = 'u32[]', space=smem, size = 0x4, offset = 0x4, fixed_abs, tag = 'smem constant byte address 0x4 - core index']
  #allocation1 [shape = 'u32[144,128]{1,0:T(1,128)}', space=vmem, size = 0x12000, scoped, tag = 'internal scratch']
  %s0 = inlined_call_operand.vmem [shape: f32[64,1], index: 0, kind: input, shape index: {}]
  %s1 = inlined_call_operand.vmem [shape: bf16[128,128], index: 1, kind: input, shape index: {}]
  %s2 = inlined_call_operand.vmem [shape: f32[8,256], index: 2, kind: input, shape index: {}]
  %s3 = inlined_call_operand.vmem [shape: f32[8,1], index: 3, kind: output, shape index: {}]
  %s4 = sld [smem:[#allocation0]]
  $region22: #{lstm_model_forward.1} parent=0
    _
  %s6 = ssub.s32 1, %s4
  %s7 = scalar_select 0, %s6, %s4
  // Predicated region
  $region2: #{lstm_model_forward.1} parent=0 // pred_check
    _
  $region3: #{lstm_model_forward.1} parent=0 // pred_check_branch
    %9 = sbr.rel (0) target = $region5
  $region4: #{lstm_model_forward.1} parent=0 // pred_region
    _
  $region5: #{lstm_model_forward.1} parent=0 // pred_fallthru
    _
  // Predicated region
  $region6: #{lstm_model_forward.1} parent=0 // pred_check
    _
  $region7: #{lstm_model_forward.1} parent=0 // pred_check_branch
    %11 = sbr.rel (0) target = $region9
  $region8: #{lstm_model_forward.1} parent=0 // pred_region
    _
  $region9: #{lstm_model_forward.1} parent=0 // pred_fallthru
    _
  // Predicated region
  $region10: #{lstm_model_forward.1} parent=0 // pred_check
    _
  $region11: #{lstm_model_forward.1} parent=0 // pred_check_branch
    %13 = sbr.rel (0) target = $region13
  $region12: #{lstm_model_forward.1} parent=0 // pred_region
    _
  $region13: #{lstm_model_forward.1} parent=0 // pred_fallthru
    _
  %v15 = vld [vmem:[%s2] ss:$0 sm:$0xff]
  %v16 = vld [vmem:[%s2 + $0x1] ss:$0 sm:$0xff]
  %v17 = vld [vmem:[%s2 + $0x2] ss:$0 sm:$0xff]
  %v18 = vld [vmem:[%s1] sm:$0xf]
  %v19 = vld [vmem:[%s1 + $0x4] sm:$0xf]
  %v20 = vld [vmem:[%s1 + $0x8] sm:$0xf]
  %v21 = vld [vmem:[%s1 + $0xc] sm:$0xf]
  %v22 = vld [vmem:[%s1 + $0x10] sm:$0xf]
  %v23 = vld [vmem:[%s1 + $0x14] sm:$0xf]
  %v24 = vld [vmem:[%s1 + $0x18] sm:$0xf]
  %v25 = vld [vmem:[%s1 + $0x1c] sm:$0xf]
  %v26 = vld [vmem:[%s1 + $0x20] sm:$0xf]
  %v27 = vld [vmem:[%s1 + $0x24] sm:$0xf]
  %v28 = vld [vmem:[%s1 + $0x28] sm:$0xf]
  %v29 = vld [vmem:[%s1 + $0x2c] sm:$0xf]
  %v30 = vld [vmem:[%s1 + $0x30] sm:$0xf]
  %v31 = vld [vmem:[%s1 + $0x34] sm:$0xf]
  %v32 = vld [vmem:[%s1 + $0x38] sm:$0xf]
  %v33 = vld [vmem:[%s1 + $0x3c] sm:$0xf]
  %v34 = vld [vmem:[%s2 + $0xa] ss:$0 sm:$0xff]
  %v35 = vld [vmem:[%s0] sm:$0xff]
  %v36 = vld [vmem:[%s0 + $0x8] sm:$0xff]
  %v37 = vld [vmem:[%s0 + $0x10] sm:$0xff]
  %v38 = vld [vmem:[%s0 + $0x18] sm:$0xff]
  %v39 = vld [vmem:[%s0 + $0x20] sm:$0xff]
  %v40 = vld [vmem:[%s0 + $0x28] sm:$0xff]
  %v41 = vld [vmem:[%s0 + $0x30] sm:$0xff]
  %v42 = vld [vmem:[%s0 + $0x38] sm:$0xff]
  %44 = vset.pattern.permute.xlu0 0
  %45 = vperm.xlu0 %44, %v35
  %v46 = vpop.permute.xlu0 %45
  %49 = vset.pattern.permute.xlu0 0
  %50 = vperm.xlu0 %49, %v36
  %v51 = vpop.permute.xlu0 %50
  %54 = vset.pattern.permute.xlu0 0
  %55 = vperm.xlu0 %54, %v37
  %v56 = vpop.permute.xlu0 %55
  %59 = vset.pattern.permute.xlu0 0
  %60 = vperm.xlu0 %59, %v38
  %v61 = vpop.permute.xlu0 %60
  %64 = vset.pattern.permute.xlu0 0
  %65 = vperm.xlu0 %64, %v39
  %v66 = vpop.permute.xlu0 %65
  %69 = vset.pattern.permute.xlu0 0
  %70 = vperm.xlu0 %69, %v40
  %v71 = vpop.permute.xlu0 %70
  %74 = vset.pattern.permute.xlu0 0
  %75 = vperm.xlu0 %74, %v41
  %v76 = vpop.permute.xlu0 %75
  %79 = vset.pattern.permute.xlu0 0
  %80 = vperm.xlu0 %79, %v42
  %v81 = vpop.permute.xlu0 %80
  %v83 = vmul.f32 %v46, %v15
  %v84 = vmul.f32 %v51, %v15
  %v85 = vmul.f32 %v56, %v15
  %v86 = vmul.f32 %v61, %v15
  %v87 = vmul.f32 %v66, %v15
  %v88 = vmul.f32 %v71, %v15
  %v89 = vmul.f32 %v76, %v15
  %v90 = vmul.f32 %v81, %v15
  %v91 = vadd.f32 %v83, %v16
  %v92 = vadd.f32 %v84, %v16
  %v93 = vadd.f32 %v85, %v16
  %v94 = vadd.f32 %v86, %v16
  %v95 = vadd.f32 %v87, %v16
  %v96 = vadd.f32 %v88, %v16
  %v97 = vadd.f32 %v89, %v16
  %v98 = vadd.f32 %v90, %v16
  %v99 = vmax.f32 %v91, 0.0
  %v100 = vmax.f32 %v92, 0.0
  %v101 = vmax.f32 %v93, 0.0
  %v102 = vmax.f32 %v94, 0.0
  %v103 = vmax.f32 %v95, 0.0
  %v104 = vmax.f32 %v96, 0.0
  %v105 = vmax.f32 %v97, 0.0
  %v106 = vmax.f32 %v98, 0.0
  %v107 = vpack.c.bf16 %v100, %v99
  %v108 = vpack.c.bf16 %v102, %v101
  %v109 = vpack.c.bf16 %v104, %v103
  %v110 = vpack.c.bf16 %v106, %v105
  %v115 = vunpack.c.l.b16 %v18
  %v116 = vunpack.c.l.b16 %v19
  %v117 = vunpack.c.l.b16 %v20
  %v118 = vunpack.c.l.b16 %v21
  %v119 = vpack.c.b16 %v116, %v115
  %v120 = vpack.c.b16 %v118, %v117
  %vm123 = vcmask 261120
  %v125 = vsel %vm123, %v107, 0
  %v128 = vsel %vm123, %v108, 0
  %v131 = vsel %vm123, %v109, 0
  %v134 = vsel %vm123, %v110, 0
  %136 = vmatprep.subr.bf16.mxu0 0
  %137 = vmatpush1.bf16.msra.mxu0 0
  %138 = vmatprep.subr.bf16.mxu0 0
  %139 = vmatpush1.bf16.msra.mxu0 0
  %140 = vmatprep.subr.bf16.mxu0 0
  %141 = vmatpush1.bf16.msra.mxu0 0
  %142 = vmatprep.subr.bf16.mxu0 0
  %143 = vmatpush1.bf16.msra.mxu0 0
  %144 = vmatprep.subr.bf16.mxu0 0
  %145 = vmatpush1.bf16.msra.mxu0 0
  %146 = vmatprep.subr.bf16.mxu0 0
  %147 = vmatpush1.bf16.msra.mxu0 0
  %148 = vmatprep.subr.bf16.mxu0 0
  %149 = vmatpush1.bf16.msra.mxu0 %v120
  %150 = vmatprep.subr.bf16.mxu0 0
  %151 = vmatpush1.bf16.msra.mxu0 %v119
  %152 = vmatprep.subr.bf16.mxu0 0
  %153 = vmatpush2.bf16.msra.mxu0 0
  %154 = vmatprep.subr.bf16.mxu0 0
  %155 = vmatpush2.bf16.msra.mxu0 0
  %156 = vmatprep.subr.bf16.mxu0 0
  %157 = vmatpush2.bf16.msra.mxu0 0
  %158 = vmatprep.subr.bf16.mxu0 0
  %159 = vmatpush2.bf16.msra.mxu0 0
  %160 = vmatprep.subr.bf16.mxu0 0
  %161 = vmatpush2.bf16.msra.mxu0 0
  %162 = vmatprep.subr.bf16.mxu0 0
  %163 = vmatpush2.bf16.msra.mxu0 0
  %164 = vmatprep.subr.bf16.mxu0 0
  %165 = vmatpush2.bf16.msra.mxu0 0
  %166 = vmatprep.subr.bf16.mxu0 0
  %167 = vmatpush2.bf16.msra.mxu0 0
  %168 = vmatprep.mubr.bf16.mxu0 0
  %169 = vmatmul.mubr.bf16.gmra.mxu0 %v125
  %v170 = vpop.f32.mrf.mxu0
  %v171 = vadd.f32 %v17, %v170
  %v172 = vpop.f32.mrf.mxu0
  %v173 = vpop.f32.mrf.mxu0
  %v174 = vadd.f32 %v17, %v173
  %v175 = vpop.f32.mrf.mxu0
  %176 = vmatprep.mubr.bf16.mxu0 0
  %177 = vmatmul.mubr.bf16.gmra.mxu0 %v128
  %v178 = vpop.f32.mrf.mxu0
  %v179 = vadd.f32 %v17, %v178
  %v180 = vpop.f32.mrf.mxu0
  %v181 = vpop.f32.mrf.mxu0
  %v182 = vadd.f32 %v17, %v181
  %v183 = vpop.f32.mrf.mxu0
  %184 = vmatprep.mubr.bf16.mxu0 0
  %185 = vmatmul.mubr.bf16.gmra.mxu0 %v131
  %v186 = vpop.f32.mrf.mxu0
  %v187 = vadd.f32 %v17, %v186
  %v188 = vpop.f32.mrf.mxu0
  %v189 = vpop.f32.mrf.mxu0
  %v190 = vadd.f32 %v17, %v189
  %v191 = vpop.f32.mrf.mxu0
  %192 = vmatprep.mubr.bf16.mxu0 0
  %193 = vmatmul.mubr.bf16.gmra.mxu0 %v134
  %v194 = vpop.f32.mrf.mxu0
  %v195 = vadd.f32 %v17, %v194
  %v196 = vpop.f32.mrf.mxu0
  %v197 = vpop.f32.mrf.mxu0
  %v198 = vadd.f32 %v17, %v197
  %v199 = vpop.f32.mrf.mxu0
  %200 = vdwg.mxu0
  %v205 = vunpack.c.l.b16 %v26
  %v206 = vunpack.c.l.b16 %v27
  %v207 = vunpack.c.l.b16 %v28
  %v208 = vunpack.c.l.b16 %v29
  %v209 = vpack.c.b16 %v206, %v205
  %v210 = vpack.c.b16 %v208, %v207
  %v214 = vsel %vm123, 0, 0
  %216 = vmatprep.subr.bf16.mxu0 0
  %217 = vmatpush1.bf16.msra.mxu0 0
  %218 = vmatprep.subr.bf16.mxu0 0
  %219 = vmatpush1.bf16.msra.mxu0 0
  %220 = vmatprep.subr.bf16.mxu0 0
  %221 = vmatpush1.bf16.msra.mxu0 0
  %222 = vmatprep.subr.bf16.mxu0 0
  %223 = vmatpush1.bf16.msra.mxu0 0
  %224 = vmatprep.subr.bf16.mxu0 0
  %225 = vmatpush1.bf16.msra.mxu0 0
  %226 = vmatprep.subr.bf16.mxu0 0
  %227 = vmatpush1.bf16.msra.mxu0 0
  %228 = vmatprep.subr.bf16.mxu0 0
  %229 = vmatpush1.bf16.msra.mxu0 %v210
  %230 = vmatprep.subr.bf16.mxu0 0
  %231 = vmatpush1.bf16.msra.mxu0 %v209
  %232 = vmatprep.subr.bf16.mxu0 0
  %233 = vmatpush2.bf16.msra.mxu0 0
  %234 = vmatprep.subr.bf16.mxu0 0
  %235 = vmatpush2.bf16.msra.mxu0 0
  %236 = vmatprep.subr.bf16.mxu0 0
  %237 = vmatpush2.bf16.msra.mxu0 0
  %238 = vmatprep.subr.bf16.mxu0 0
  %239 = vmatpush2.bf16.msra.mxu0 0
  %240 = vmatprep.subr.bf16.mxu0 0
  %241 = vmatpush2.bf16.msra.mxu0 0
  %242 = vmatprep.subr.bf16.mxu0 0
  %243 = vmatpush2.bf16.msra.mxu0 0
  %244 = vmatprep.subr.bf16.mxu0 0
  %245 = vmatpush2.bf16.msra.mxu0 0
  %246 = vmatprep.subr.bf16.mxu0 0
  %247 = vmatpush2.bf16.msra.mxu0 0
  %248 = vmatprep.mubr.bf16.mxu0 0
  %249 = vmatmul.mubr.bf16.gmra.mxu0 %v214
  %v250 = vpop.f32.mrf.mxu0
  %v251 = vadd.f32 0.0, %v250
  %v252 = vpop.f32.mrf.mxu0
  %v253 = vpop.f32.mrf.mxu0
  %v254 = vpop.f32.mrf.mxu0
  %255 = vdwg.mxu0
  %v256 = vadd.f32 %v171, %v251
  %v257 = vxor.u32 %v256, 2147483648
  %v258 = vmul.f32 %v257, 1.442695
  %v259 = vpow.pop %v258
  %v260 = vadd.f32 %v259, 1.0
  %v261 = vrcp.pop %v260
  %v262 = vmul.f32 1.0, %v261
  %v263 = vmul.f32 %v262, 2.0
  %v264 = vsub.f32 %v263, 1.0
  %v265 = vmul.f32 %v262, 0.0
  %267 = vrot.lane.b32.xlu0 %v264, 64
  %v268 = vpop.permute.xlu0 %267
  %v270 = vmul.f32 %v262, %v268
  %272 = vrot.lane.b32.xlu0 %v270, 32
  %v273 = vpop.permute.xlu0 %272
  %v275 = vadd.f32 %v265, %v273
  %v276 = vtanh.pop %v275
  %278 = vrot.lane.b32.xlu0 %v276, 64
  %v279 = vpop.permute.xlu0 %278
  %v281 = vmul.f32 %v262, %v279
  %v282 = vpack.c.bf16 %v281, %v281
  %v287 = vunpack.c.l.b16 %v30
  %v288 = vunpack.c.l.b16 %v31
  %v289 = vunpack.c.l.b16 %v32
  %v290 = vunpack.c.l.b16 %v33
  %v291 = vpack.c.b16 %v288, %v287
  %v292 = vpack.c.b16 %v290, %v289
  %295 = vmatprep.subr.bf16.mxu0 0
  %296 = vmatpush1.bf16.msra.mxu0 0
  %297 = vmatprep.subr.bf16.mxu0 0
  %298 = vmatpush1.bf16.msra.mxu0 0
  %299 = vmatprep.subr.bf16.mxu0 0
  %300 = vmatpush1.bf16.msra.mxu0 0
  %301 = vmatprep.subr.bf16.mxu0 0
  %302 = vmatpush1.bf16.msra.mxu0 0
  %303 = vmatprep.subr.bf16.mxu0 0
  %304 = vmatpush1.bf16.msra.mxu0 0
  %305 = vmatprep.subr.bf16.mxu0 0
  %306 = vmatpush1.bf16.msra.mxu0 0
  %307 = vmatprep.subr.bf16.mxu0 0
  %308 = vmatpush1.bf16.msra.mxu0 %v292
  %309 = vmatprep.subr.bf16.mxu0 0
  %310 = vmatpush1.bf16.msra.mxu0 %v291
  %311 = vmatprep.subr.bf16.mxu0 0
  %312 = vmatpush2.bf16.msra.mxu0 0
  %313 = vmatprep.subr.bf16.mxu0 0
  %314 = vmatpush2.bf16.msra.mxu0 0
  %315 = vmatprep.subr.bf16.mxu0 0
  %316 = vmatpush2.bf16.msra.mxu0 0
  %317 = vmatprep.subr.bf16.mxu0 0
  %318 = vmatpush2.bf16.msra.mxu0 0
  %319 = vmatprep.subr.bf16.mxu0 0
  %320 = vmatpush2.bf16.msra.mxu0 0
  %321 = vmatprep.subr.bf16.mxu0 0
  %322 = vmatpush2.bf16.msra.mxu0 0
  %323 = vmatprep.subr.bf16.mxu0 0
  %324 = vmatpush2.bf16.msra.mxu0 0
  %325 = vmatprep.subr.bf16.mxu0 0
  %326 = vmatpush2.bf16.msra.mxu0 0
  %327 = vmatprep.mubr.bf16.mxu0 0
  %328 = vmatmul.mubr.bf16.gmra.mxu0 %v214
  %v329 = vpop.f32.mrf.mxu0
  %v330 = vadd.f32 %v34, %v329
  %v331 = vpop.f32.mrf.mxu0
  %v332 = vpop.f32.mrf.mxu0
  %v333 = vpop.f32.mrf.mxu0
  %334 = vdwg.mxu0
  %336 = vrot.lane.b32.xlu0 %v282, 32
  %v337 = vpop.permute.xlu0 %336
  %v342 = vunpack.c.l.b16 %v22
  %v343 = vunpack.c.l.b16 %v23
  %v344 = vunpack.c.l.b16 %v24
  %v345 = vunpack.c.l.b16 %v25
  %v346 = vpack.c.b16 %v343, %v342
  %v347 = vpack.c.b16 %v345, %v344
  %v351 = vsel %vm123, %v337, 0
  %353 = vmatprep.subr.bf16.mxu0 0
  %354 = vmatpush1.bf16.msra.mxu0 0
  %355 = vmatprep.subr.bf16.mxu0 0
  %356 = vmatpush1.bf16.msra.mxu0 0
  %357 = vmatprep.subr.bf16.mxu0 0
  %358 = vmatpush1.bf16.msra.mxu0 0
  %359 = vmatprep.subr.bf16.mxu0 0
  %360 = vmatpush1.bf16.msra.mxu0 0
  %361 = vmatprep.subr.bf16.mxu0 0
  %362 = vmatpush1.bf16.msra.mxu0 0
  %363 = vmatprep.subr.bf16.mxu0 0
  %364 = vmatpush1.bf16.msra.mxu0 0
  %365 = vmatprep.subr.bf16.mxu0 0
  %366 = vmatpush1.bf16.msra.mxu0 %v347
  %367 = vmatprep.subr.bf16.mxu0 0
  %368 = vmatpush1.bf16.msra.mxu0 %v346
  %369 = vmatprep.subr.bf16.mxu0 0
  %370 = vmatpush2.bf16.msra.mxu0 0
  %371 = vmatprep.subr.bf16.mxu0 0
  %372 = vmatpush2.bf16.msra.mxu0 0
  %373 = vmatprep.subr.bf16.mxu0 0
  %374 = vmatpush2.bf16.msra.mxu0 0
  %375 = vmatprep.subr.bf16.mxu0 0
  %376 = vmatpush2.bf16.msra.mxu0 0
  %377 = vmatprep.subr.bf16.mxu0 0
  %378 = vmatpush2.bf16.msra.mxu0 0
  %379 = vmatprep.subr.bf16.mxu0 0
  %380 = vmatpush2.bf16.msra.mxu0 0
  %381 = vmatprep.subr.bf16.mxu0 0
  %382 = vmatpush2.bf16.msra.mxu0 0
  %383 = vmatprep.subr.bf16.mxu0 0
  %384 = vmatpush2.bf16.msra.mxu0 0
  %385 = vmatprep.mubr.bf16.mxu0 0
  %386 = vmatmul.mubr.bf16.gmra.mxu0 %v351
  %v387 = vpop.f32.mrf.mxu0
  %v388 = vadd.f32 %v330, %v387
  %v389 = vpop.f32.mrf.mxu0
  %v390 = vpop.f32.mrf.mxu0
  %v391 = vpop.f32.mrf.mxu0
  %392 = vdwg.mxu0
  %v393 = vxor.u32 %v388, 2147483648
  %v394 = vmul.f32 %v393, 1.442695
  %v395 = vpow.pop %v394
  %v396 = vadd.f32 %v395, 1.0
  %v397 = vrcp.pop %v396
  %v398 = vmul.f32 1.0, %v397
  %v399 = vmul.f32 %v398, 2.0
  %v400 = vsub.f32 %v399, 1.0
  %v401 = vmul.f32 %v398, 0.0
  %403 = vrot.lane.b32.xlu0 %v400, 64
  %v404 = vpop.permute.xlu0 %403
  %v406 = vmul.f32 %v398, %v404
  %408 = vrot.lane.b32.xlu0 %v406, 32
  %v409 = vpop.permute.xlu0 %408
  %v411 = vadd.f32 %v401, %v409
  %v412 = vtanh.pop %v411
  %414 = vrot.lane.b32.xlu0 %v412, 64
  %v415 = vpop.permute.xlu0 %414
  %v417 = vmul.f32 %v398, %v415
  %418 = vmatprep.subr.bf16.mxu0 0
  %419 = vmatpush1.bf16.msra.mxu0 0
  %420 = vmatprep.subr.bf16.mxu0 0
  %421 = vmatpush1.bf16.msra.mxu0 0
  %422 = vmatprep.subr.bf16.mxu0 0
  %423 = vmatpush1.bf16.msra.mxu0 0
  %424 = vmatprep.subr.bf16.mxu0 0
  %425 = vmatpush1.bf16.msra.mxu0 0
  %426 = vmatprep.subr.bf16.mxu0 0
  %427 = vmatpush1.bf16.msra.mxu0 0
  %428 = vmatprep.subr.bf16.mxu0 0
  %429 = vmatpush1.bf16.msra.mxu0 0
  %430 = vmatprep.subr.bf16.mxu0 0
  %431 = vmatpush1.bf16.msra.mxu0 %v210
  %432 = vmatprep.subr.bf16.mxu0 0
  %433 = vmatpush1.bf16.msra.mxu0 %v209
  %434 = vmatprep.subr.bf16.mxu0 0
  %435 = vmatpush2.bf16.msra.mxu0 0
  %436 = vmatprep.subr.bf16.mxu0 0
  %437 = vmatpush2.bf16.msra.mxu0 0
  %438 = vmatprep.subr.bf16.mxu0 0
  %439 = vmatpush2.bf16.msra.mxu0 0
  %440 = vmatprep.subr.bf16.mxu0 0
  %441 = vmatpush2.bf16.msra.mxu0 0
  %442 = vmatprep.subr.bf16.mxu0 0
  %443 = vmatpush2.bf16.msra.mxu0 0
  %444 = vmatprep.subr.bf16.mxu0 0
  %445 = vmatpush2.bf16.msra.mxu0 0
  %446 = vmatprep.subr.bf16.mxu0 0
  %447 = vmatpush2.bf16.msra.mxu0 0
  %448 = vmatprep.subr.bf16.mxu0 0
  %449 = vmatpush2.bf16.msra.mxu0 0
  %450 = vmatprep.mubr.bf16.mxu0 0
  %451 = vmatmul.mubr.bf16.gmra.mxu0 %v351
  %v452 = vpop.f32.mrf.mxu0
  %v453 = vadd.f32 0.0, %v452
  %v454 = vpop.f32.mrf.mxu0
  %v455 = vpop.f32.mrf.mxu0
  %v456 = vpop.f32.mrf.mxu0
  %457 = vdwg.mxu0
  %v458 = vpack.c.bf16 %v417, %v417
  %v459 = vadd.f32 %v174, %v453
  %v460 = vxor.u32 %v459, 2147483648
  %v461 = vmul.f32 %v460, 1.442695
  %v462 = vpow.pop %v461
  %v463 = vadd.f32 %v462, 1.0
  %v464 = vrcp.pop %v463
  %v465 = vmul.f32 1.0, %v464
  %v466 = vmul.f32 %v465, 2.0
  %v467 = vsub.f32 %v466, 1.0
  %v468 = vmul.f32 %v465, %v275
  %470 = vrot.lane.b32.xlu0 %v467, 64
  %v471 = vpop.permute.xlu0 %470
  %v473 = vmul.f32 %v465, %v471
  %475 = vrot.lane.b32.xlu0 %v473, 32
  %v476 = vpop.permute.xlu0 %475
  %v478 = vadd.f32 %v468, %v476
  %v479 = vtanh.pop %v478
  %481 = vrot.lane.b32.xlu0 %v479, 64
  %v482 = vpop.permute.xlu0 %481
  %v484 = vmul.f32 %v465, %v482
  %v485 = vpack.c.bf16 %v484, %v484
  %487 = vrot.lane.b32.xlu0 %v458, 32
  %v488 = vpop.permute.xlu0 %487
  %v490 = vsel %vm123, %v488, 0
  %492 = vmatprep.subr.bf16.mxu0 0
  %493 = vmatpush1.bf16.msra.mxu0 0
  %494 = vmatprep.subr.bf16.mxu0 0
  %495 = vmatpush1.bf16.msra.mxu0 0
  %496 = vmatprep.subr.bf16.mxu0 0
  %497 = vmatpush1.bf16.msra.mxu0 0
  %498 = vmatprep.subr.bf16.mxu0 0
  %499 = vmatpush1.bf16.msra.mxu0 0
  %500 = vmatprep.subr.bf16.mxu0 0
  %501 = vmatpush1.bf16.msra.mxu0 0
  %502 = vmatprep.subr.bf16.mxu0 0
  %503 = vmatpush1.bf16.msra.mxu0 0
  %504 = vmatprep.subr.bf16.mxu0 0
  %505 = vmatpush1.bf16.msra.mxu0 %v292
  %506 = vmatprep.subr.bf16.mxu0 0
  %507 = vmatpush1.bf16.msra.mxu0 %v291
  %508 = vmatprep.subr.bf16.mxu0 0
  %509 = vmatpush2.bf16.msra.mxu0 0
  %510 = vmatprep.subr.bf16.mxu0 0
  %511 = vmatpush2.bf16.msra.mxu0 0
  %512 = vmatprep.subr.bf16.mxu0 0
  %513 = vmatpush2.bf16.msra.mxu0 0
  %514 = vmatprep.subr.bf16.mxu0 0
  %515 = vmatpush2.bf16.msra.mxu0 0
  %516 = vmatprep.subr.bf16.mxu0 0
  %517 = vmatpush2.bf16.msra.mxu0 0
  %518 = vmatprep.subr.bf16.mxu0 0
  %519 = vmatpush2.bf16.msra.mxu0 0
  %520 = vmatprep.subr.bf16.mxu0 0
  %521 = vmatpush2.bf16.msra.mxu0 0
  %522 = vmatprep.subr.bf16.mxu0 0
  %523 = vmatpush2.bf16.msra.mxu0 0
  %524 = vmatprep.mubr.bf16.mxu0 0
  %525 = vmatmul.mubr.bf16.gmra.mxu0 %v490
  %v526 = vpop.f32.mrf.mxu0
  %v527 = vadd.f32 %v34, %v526
  %v528 = vpop.f32.mrf.mxu0
  %v529 = vpop.f32.mrf.mxu0
  %v530 = vpop.f32.mrf.mxu0
  %531 = vdwg.mxu0
  %533 = vrot.lane.b32.xlu0 %v485, 32
  %v534 = vpop.permute.xlu0 %533
  %v536 = vsel %vm123, %v534, 0
  %538 = vmatprep.subr.bf16.mxu0 0
  %539 = vmatpush1.bf16.msra.mxu0 0
  %540 = vmatprep.subr.bf16.mxu0 0
  %541 = vmatpush1.bf16.msra.mxu0 0
  %542 = vmatprep.subr.bf16.mxu0 0
  %543 = vmatpush1.bf16.msra.mxu0 0
  %544 = vmatprep.subr.bf16.mxu0 0
  %545 = vmatpush1.bf16.msra.mxu0 0
  %546 = vmatprep.subr.bf16.mxu0 0
  %547 = vmatpush1.bf16.msra.mxu0 0
  %548 = vmatprep.subr.bf16.mxu0 0
  %549 = vmatpush1.bf16.msra.mxu0 0
  %550 = vmatprep.subr.bf16.mxu0 0
  %551 = vmatpush1.bf16.msra.mxu0 %v347
  %552 = vmatprep.subr.bf16.mxu0 0
  %553 = vmatpush1.bf16.msra.mxu0 %v346
  %554 = vmatprep.subr.bf16.mxu0 0
  %555 = vmatpush2.bf16.msra.mxu0 0
  %556 = vmatprep.subr.bf16.mxu0 0
  %557 = vmatpush2.bf16.msra.mxu0 0
  %558 = vmatprep.subr.bf16.mxu0 0
  %559 = vmatpush2.bf16.msra.mxu0 0
  %560 = vmatprep.subr.bf16.mxu0 0
  %561 = vmatpush2.bf16.msra.mxu0 0
  %562 = vmatprep.subr.bf16.mxu0 0
  %563 = vmatpush2.bf16.msra.mxu0 0
  %564 = vmatprep.subr.bf16.mxu0 0
  %565 = vmatpush2.bf16.msra.mxu0 0
  %566 = vmatprep.subr.bf16.mxu0 0
  %567 = vmatpush2.bf16.msra.mxu0 0
  %568 = vmatprep.subr.bf16.mxu0 0
  %569 = vmatpush2.bf16.msra.mxu0 0
  %570 = vmatprep.mubr.bf16.mxu0 0
  %571 = vmatmul.mubr.bf16.gmra.mxu0 %v536
  %v572 = vpop.f32.mrf.mxu0
  %v573 = vadd.f32 %v527, %v572
  %v574 = vpop.f32.mrf.mxu0
  %v575 = vpop.f32.mrf.mxu0
  %v576 = vpop.f32.mrf.mxu0
  %577 = vdwg.mxu0
  %v578 = vxor.u32 %v573, 2147483648
  %v579 = vmul.f32 %v578, 1.442695
  %v580 = vpow.pop %v579
  %v581 = vadd.f32 %v580, 1.0
  %v582 = vrcp.pop %v581
  %v583 = vmul.f32 1.0, %v582
  %v584 = vmul.f32 %v583, 2.0
  %v585 = vsub.f32 %v584, 1.0
  %v586 = vmul.f32 %v583, %v411
  %588 = vrot.lane.b32.xlu0 %v585, 64
  %v589 = vpop.permute.xlu0 %588
  %v591 = vmul.f32 %v583, %v589
  %593 = vrot.lane.b32.xlu0 %v591, 32
  %v594 = vpop.permute.xlu0 %593
  %v596 = vadd.f32 %v586, %v594
  %v597 = vtanh.pop %v596
  %599 = vrot.lane.b32.xlu0 %v597, 64
  %v600 = vpop.permute.xlu0 %599
  %v602 = vmul.f32 %v583, %v600
  %603 = vmatprep.subr.bf16.mxu0 0
  %604 = vmatpush1.bf16.msra.mxu0 0
  %605 = vmatprep.subr.bf16.mxu0 0
  %606 = vmatpush1.bf16.msra.mxu0 0
  %607 = vmatprep.subr.bf16.mxu0 0
  %608 = vmatpush1.bf16.msra.mxu0 0
  %609 = vmatprep.subr.bf16.mxu0 0
  %610 = vmatpush1.bf16.msra.mxu0 0
  %611 = vmatprep.subr.bf16.mxu0 0
  %612 = vmatpush1.bf16.msra.mxu0 0
  %613 = vmatprep.subr.bf16.mxu0 0
  %614 = vmatpush1.bf16.msra.mxu0 0
  %615 = vmatprep.subr.bf16.mxu0 0
  %616 = vmatpush1.bf16.msra.mxu0 %v210
  %617 = vmatprep.subr.bf16.mxu0 0
  %618 = vmatpush1.bf16.msra.mxu0 %v209
  %619 = vmatprep.subr.bf16.mxu0 0
  %620 = vmatpush2.bf16.msra.mxu0 0
  %621 = vmatprep.subr.bf16.mxu0 0
  %622 = vmatpush2.bf16.msra.mxu0 0
  %623 = vmatprep.subr.bf16.mxu0 0
  %624 = vmatpush2.bf16.msra.mxu0 0
  %625 = vmatprep.subr.bf16.mxu0 0
  %626 = vmatpush2.bf16.msra.mxu0 0
  %627 = vmatprep.subr.bf16.mxu0 0
  %628 = vmatpush2.bf16.msra.mxu0 0
  %629 = vmatprep.subr.bf16.mxu0 0
  %630 = vmatpush2.bf16.msra.mxu0 0
  %631 = vmatprep.subr.bf16.mxu0 0
  %632 = vmatpush2.bf16.msra.mxu0 0
  %633 = vmatprep.subr.bf16.mxu0 0
  %634 = vmatpush2.bf16.msra.mxu0 0
  %635 = vmatprep.mubr.bf16.mxu0 0
  %636 = vmatmul.mubr.bf16.gmra.mxu0 %v536
  %v637 = vpop.f32.mrf.mxu0
  %v638 = vadd.f32 0.0, %v637
  %v639 = vpop.f32.mrf.mxu0
  %v640 = vpop.f32.mrf.mxu0
  %v641 = vpop.f32.mrf.mxu0
  %642 = vdwg.mxu0
  %v643 = vpack.c.bf16 %v602, %v602
  %v644 = vadd.f32 %v179, %v638
  %v645 = vxor.u32 %v644, 2147483648
  %v646 = vmul.f32 %v645, 1.442695
  %v647 = vpow.pop %v646
  %v648 = vadd.f32 %v647, 1.0
  %v649 = vrcp.pop %v648
  %v650 = vmul.f32 1.0, %v649
  %v651 = vmul.f32 %v650, 2.0
  %v652 = vsub.f32 %v651, 1.0
  %v653 = vmul.f32 %v650, %v478
  %655 = vrot.lane.b32.xlu0 %v652, 64
  %v656 = vpop.permute.xlu0 %655
  %v658 = vmul.f32 %v650, %v656
  %660 = vrot.lane.b32.xlu0 %v658, 32
  %v661 = vpop.permute.xlu0 %660
  %v663 = vadd.f32 %v653, %v661
  %v664 = vtanh.pop %v663
  %666 = vrot.lane.b32.xlu0 %v664, 64
  %v667 = vpop.permute.xlu0 %666
  %v669 = vmul.f32 %v650, %v667
  %v670 = vpack.c.bf16 %v669, %v669
  %672 = vrot.lane.b32.xlu0 %v643, 32
  %v673 = vpop.permute.xlu0 %672
  %v675 = vsel %vm123, %v673, 0
  %677 = vmatprep.subr.bf16.mxu0 0
  %678 = vmatpush1.bf16.msra.mxu0 0
  %679 = vmatprep.subr.bf16.mxu0 0
  %680 = vmatpush1.bf16.msra.mxu0 0
  %681 = vmatprep.subr.bf16.mxu0 0
  %682 = vmatpush1.bf16.msra.mxu0 0
  %683 = vmatprep.subr.bf16.mxu0 0
  %684 = vmatpush1.bf16.msra.mxu0 0
  %685 = vmatprep.subr.bf16.mxu0 0
  %686 = vmatpush1.bf16.msra.mxu0 0
  %687 = vmatprep.subr.bf16.mxu0 0
  %688 = vmatpush1.bf16.msra.mxu0 0
  %689 = vmatprep.subr.bf16.mxu0 0
  %690 = vmatpush1.bf16.msra.mxu0 %v292
  %691 = vmatprep.subr.bf16.mxu0 0
  %692 = vmatpush1.bf16.msra.mxu0 %v291
  %693 = vmatprep.subr.bf16.mxu0 0
  %694 = vmatpush2.bf16.msra.mxu0 0
  %695 = vmatprep.subr.bf16.mxu0 0
  %696 = vmatpush2.bf16.msra.mxu0 0
  %697 = vmatprep.subr.bf16.mxu0 0
  %698 = vmatpush2.bf16.msra.mxu0 0
  %699 = vmatprep.subr.bf16.mxu0 0
  %700 = vmatpush2.bf16.msra.mxu0 0
  %701 = vmatprep.subr.bf16.mxu0 0
  %702 = vmatpush2.bf16.msra.mxu0 0
  %703 = vmatprep.subr.bf16.mxu0 0
  %704 = vmatpush2.bf16.msra.mxu0 0
  %705 = vmatprep.subr.bf16.mxu0 0
  %706 = vmatpush2.bf16.msra.mxu0 0
  %707 = vmatprep.subr.bf16.mxu0 0
  %708 = vmatpush2.bf16.msra.mxu0 0
  %709 = vmatprep.mubr.bf16.mxu0 0
  %710 = vmatmul.mubr.bf16.gmra.mxu0 %v675
  %v711 = vpop.f32.mrf.mxu0
  %v712 = vadd.f32 %v34, %v711
  %v713 = vpop.f32.mrf.mxu0
  %v714 = vpop.f32.mrf.mxu0
  %v715 = vpop.f32.mrf.mxu0
  %716 = vdwg.mxu0
  %718 = vrot.lane.b32.xlu0 %v670, 32
  %v719 = vpop.permute.xlu0 %718
  %v721 = vsel %vm123, %v719, 0
  %723 = vmatprep.subr.bf16.mxu0 0
  %724 = vmatpush1.bf16.msra.mxu0 0
  %725 = vmatprep.subr.bf16.mxu0 0
  %726 = vmatpush1.bf16.msra.mxu0 0
  %727 = vmatprep.subr.bf16.mxu0 0
  %728 = vmatpush1.bf16.msra.mxu0 0
  %729 = vmatprep.subr.bf16.mxu0 0
  %730 = vmatpush1.bf16.msra.mxu0 0
  %731 = vmatprep.subr.bf16.mxu0 0
  %732 = vmatpush1.bf16.msra.mxu0 0
  %733 = vmatprep.subr.bf16.mxu0 0
  %734 = vmatpush1.bf16.msra.mxu0 0
  %735 = vmatprep.subr.bf16.mxu0 0
  %736 = vmatpush1.bf16.msra.mxu0 %v347
  %737 = vmatprep.subr.bf16.mxu0 0
  %738 = vmatpush1.bf16.msra.mxu0 %v346
  %739 = vmatprep.subr.bf16.mxu0 0
  %740 = vmatpush2.bf16.msra.mxu0 0
  %741 = vmatprep.subr.bf16.mxu0 0
  %742 = vmatpush2.bf16.msra.mxu0 0
  %743 = vmatprep.subr.bf16.mxu0 0
  %744 = vmatpush2.bf16.msra.mxu0 0
  %745 = vmatprep.subr.bf16.mxu0 0
  %746 = vmatpush2.bf16.msra.mxu0 0
  %747 = vmatprep.subr.bf16.mxu0 0
  %748 = vmatpush2.bf16.msra.mxu0 0
  %749 = vmatprep.subr.bf16.mxu0 0
  %750 = vmatpush2.bf16.msra.mxu0 0
  %751 = vmatprep.subr.bf16.mxu0 0
  %752 = vmatpush2.bf16.msra.mxu0 0
  %753 = vmatprep.subr.bf16.mxu0 0
  %754 = vmatpush2.bf16.msra.mxu0 0
  %755 = vmatprep.mubr.bf16.mxu0 0
  %756 = vmatmul.mubr.bf16.gmra.mxu0 %v721
  %v757 = vpop.f32.mrf.mxu0
  %v758 = vadd.f32 %v712, %v757
  %v759 = vpop.f32.mrf.mxu0
  %v760 = vpop.f32.mrf.mxu0
  %v761 = vpop.f32.mrf.mxu0
  %762 = vdwg.mxu0
  %v763 = vxor.u32 %v758, 2147483648
  %v764 = vmul.f32 %v763, 1.442695
  %v765 = vpow.pop %v764
  %v766 = vadd.f32 %v765, 1.0
  %v767 = vrcp.pop %v766
  %v768 = vmul.f32 1.0, %v767
  %v769 = vmul.f32 %v768, 2.0
  %v770 = vsub.f32 %v769, 1.0
  %v771 = vmul.f32 %v768, %v596
  %773 = vrot.lane.b32.xlu0 %v770, 64
  %v774 = vpop.permute.xlu0 %773
  %v776 = vmul.f32 %v768, %v774
  %778 = vrot.lane.b32.xlu0 %v776, 32
  %v779 = vpop.permute.xlu0 %778
  %v781 = vadd.f32 %v771, %v779
  %v782 = vtanh.pop %v781
  %784 = vrot.lane.b32.xlu0 %v782, 64
  %v785 = vpop.permute.xlu0 %784
  %v787 = vmul.f32 %v768, %v785
  %788 = vmatprep.subr.bf16.mxu0 0
  %789 = vmatpush1.bf16.msra.mxu0 0
  %790 = vmatprep.subr.bf16.mxu0 0
  %791 = vmatpush1.bf16.msra.mxu0 0
  %792 = vmatprep.subr.bf16.mxu0 0
  %793 = vmatpush1.bf16.msra.mxu0 0
  %794 = vmatprep.subr.bf16.mxu0 0
  %795 = vmatpush1.bf16.msra.mxu0 0
  %796 = vmatprep.subr.bf16.mxu0 0
  %797 = vmatpush1.bf16.msra.mxu0 0
  %798 = vmatprep.subr.bf16.mxu0 0
  %799 = vmatpush1.bf16.msra.mxu0 0
  %800 = vmatprep.subr.bf16.mxu0 0
  %801 = vmatpush1.bf16.msra.mxu0 %v210
  %802 = vmatprep.subr.bf16.mxu0 0
  %803 = vmatpush1.bf16.msra.mxu0 %v209
  %804 = vmatprep.subr.bf16.mxu0 0
  %805 = vmatpush2.bf16.msra.mxu0 0
  %806 = vmatprep.subr.bf16.mxu0 0
  %807 = vmatpush2.bf16.msra.mxu0 0
  %808 = vmatprep.subr.bf16.mxu0 0
  %809 = vmatpush2.bf16.msra.mxu0 0
  %810 = vmatprep.subr.bf16.mxu0 0
  %811 = vmatpush2.bf16.msra.mxu0 0
  %812 = vmatprep.subr.bf16.mxu0 0
  %813 = vmatpush2.bf16.msra.mxu0 0
  %814 = vmatprep.subr.bf16.mxu0 0
  %815 = vmatpush2.bf16.msra.mxu0 0
  %816 = vmatprep.subr.bf16.mxu0 0
  %817 = vmatpush2.bf16.msra.mxu0 0
  %818 = vmatprep.subr.bf16.mxu0 0
  %819 = vmatpush2.bf16.msra.mxu0 0
  %820 = vmatprep.mubr.bf16.mxu0 0
  %821 = vmatmul.mubr.bf16.gmra.mxu0 %v721
  %v822 = vpop.f32.mrf.mxu0
  %v823 = vadd.f32 0.0, %v822
  %v824 = vpop.f32.mrf.mxu0
  %v825 = vpop.f32.mrf.mxu0
  %v826 = vpop.f32.mrf.mxu0
  %827 = vdwg.mxu0
  %v828 = vpack.c.bf16 %v787, %v787
  %v829 = vadd.f32 %v182, %v823
  %v830 = vxor.u32 %v829, 2147483648
  %v831 = vmul.f32 %v830, 1.442695
  %v832 = vpow.pop %v831
  %v833 = vadd.f32 %v832, 1.0
  %v834 = vrcp.pop %v833
  %v835 = vmul.f32 1.0, %v834
  %v836 = vmul.f32 %v835, 2.0
  %v837 = vsub.f32 %v836, 1.0
  %v838 = vmul.f32 %v835, %v663
  %840 = vrot.lane.b32.xlu0 %v837, 64
  %v841 = vpop.permute.xlu0 %840
  %v843 = vmul.f32 %v835, %v841
  %845 = vrot.lane.b32.xlu0 %v843, 32
  %v846 = vpop.permute.xlu0 %845
  %v848 = vadd.f32 %v838, %v846
  %v849 = vtanh.pop %v848
  %851 = vrot.lane.b32.xlu0 %v849, 64
  %v852 = vpop.permute.xlu0 %851
  %v854 = vmul.f32 %v835, %v852
  %v855 = vpack.c.bf16 %v854, %v854
  %857 = vrot.lane.b32.xlu0 %v828, 32
  %v858 = vpop.permute.xlu0 %857
  %v860 = vsel %vm123, %v858, 0
  %862 = vmatprep.subr.bf16.mxu0 0
  %863 = vmatpush1.bf16.msra.mxu0 0
  %864 = vmatprep.subr.bf16.mxu0 0
  %865 = vmatpush1.bf16.msra.mxu0 0
  %866 = vmatprep.subr.bf16.mxu0 0
  %867 = vmatpush1.bf16.msra.mxu0 0
  %868 = vmatprep.subr.bf16.mxu0 0
  %869 = vmatpush1.bf16.msra.mxu0 0
  %870 = vmatprep.subr.bf16.mxu0 0
  %871 = vmatpush1.bf16.msra.mxu0 0
  %872 = vmatprep.subr.bf16.mxu0 0
  %873 = vmatpush1.bf16.msra.mxu0 0
  %874 = vmatprep.subr.bf16.mxu0 0
  %875 = vmatpush1.bf16.msra.mxu0 %v292
  %876 = vmatprep.subr.bf16.mxu0 0
  %877 = vmatpush1.bf16.msra.mxu0 %v291
  %878 = vmatprep.subr.bf16.mxu0 0
  %879 = vmatpush2.bf16.msra.mxu0 0
  %880 = vmatprep.subr.bf16.mxu0 0
  %881 = vmatpush2.bf16.msra.mxu0 0
  %882 = vmatprep.subr.bf16.mxu0 0
  %883 = vmatpush2.bf16.msra.mxu0 0
  %884 = vmatprep.subr.bf16.mxu0 0
  %885 = vmatpush2.bf16.msra.mxu0 0
  %886 = vmatprep.subr.bf16.mxu0 0
  %887 = vmatpush2.bf16.msra.mxu0 0
  %888 = vmatprep.subr.bf16.mxu0 0
  %889 = vmatpush2.bf16.msra.mxu0 0
  %890 = vmatprep.subr.bf16.mxu0 0
  %891 = vmatpush2.bf16.msra.mxu0 0
  %892 = vmatprep.subr.bf16.mxu0 0
  %893 = vmatpush2.bf16.msra.mxu0 0
  %894 = vmatprep.mubr.bf16.mxu0 0
  %895 = vmatmul.mubr.bf16.gmra.mxu0 %v860
  %v896 = vpop.f32.mrf.mxu0
  %v897 = vadd.f32 %v34, %v896
  %v898 = vpop.f32.mrf.mxu0
  %v899 = vpop.f32.mrf.mxu0
  %v900 = vpop.f32.mrf.mxu0
  %901 = vdwg.mxu0
  %903 = vrot.lane.b32.xlu0 %v855, 32
  %v904 = vpop.permute.xlu0 %903
  %v906 = vsel %vm123, %v904, 0
  %908 = vmatprep.subr.bf16.mxu0 0
  %909 = vmatpush1.bf16.msra.mxu0 0
  %910 = vmatprep.subr.bf16.mxu0 0
  %911 = vmatpush1.bf16.msra.mxu0 0
  %912 = vmatprep.subr.bf16.mxu0 0
  %913 = vmatpush1.bf16.msra.mxu0 0
  %914 = vmatprep.subr.bf16.mxu0 0
  %915 = vmatpush1.bf16.msra.mxu0 0
  %916 = vmatprep.subr.bf16.mxu0 0
  %917 = vmatpush1.bf16.msra.mxu0 0
  %918 = vmatprep.subr.bf16.mxu0 0
  %919 = vmatpush1.bf16.msra.mxu0 0
  %920 = vmatprep.subr.bf16.mxu0 0
  %921 = vmatpush1.bf16.msra.mxu0 %v347
  %922 = vmatprep.subr.bf16.mxu0 0
  %923 = vmatpush1.bf16.msra.mxu0 %v346
  %924 = vmatprep.subr.bf16.mxu0 0
  %925 = vmatpush2.bf16.msra.mxu0 0
  %926 = vmatprep.subr.bf16.mxu0 0
  %927 = vmatpush2.bf16.msra.mxu0 0
  %928 = vmatprep.subr.bf16.mxu0 0
  %929 = vmatpush2.bf16.msra.mxu0 0
  %930 = vmatprep.subr.bf16.mxu0 0
  %931 = vmatpush2.bf16.msra.mxu0 0
  %932 = vmatprep.subr.bf16.mxu0 0
  %933 = vmatpush2.bf16.msra.mxu0 0
  %934 = vmatprep.subr.bf16.mxu0 0
  %935 = vmatpush2.bf16.msra.mxu0 0
  %936 = vmatprep.subr.bf16.mxu0 0
  %937 = vmatpush2.bf16.msra.mxu0 0
  %938 = vmatprep.subr.bf16.mxu0 0
  %939 = vmatpush2.bf16.msra.mxu0 0
  %940 = vmatprep.mubr.bf16.mxu0 0
  %941 = vmatmul.mubr.bf16.gmra.mxu0 %v906
  %v942 = vpop.f32.mrf.mxu0
  %v943 = vadd.f32 %v897, %v942
  %v944 = vpop.f32.mrf.mxu0
  %v945 = vpop.f32.mrf.mxu0
  %v946 = vpop.f32.mrf.mxu0
  %947 = vdwg.mxu0
  %v948 = vxor.u32 %v943, 2147483648
  %v949 = vmul.f32 %v948, 1.442695
  %v950 = vpow.pop %v949
  %v951 = vadd.f32 %v950, 1.0
  %v952 = vrcp.pop %v951
  %v953 = vmul.f32 1.0, %v952
  %v954 = vmul.f32 %v953, 2.0
  %v955 = vsub.f32 %v954, 1.0
  %v956 = vmul.f32 %v953, %v781
  %958 = vrot.lane.b32.xlu0 %v955, 64
  %v959 = vpop.permute.xlu0 %958
  %v961 = vmul.f32 %v953, %v959
  %963 = vrot.lane.b32.xlu0 %v961, 32
  %v964 = vpop.permute.xlu0 %963
  %v966 = vadd.f32 %v956, %v964
  %v967 = vtanh.pop %v966
  %969 = vrot.lane.b32.xlu0 %v967, 64
  %v970 = vpop.permute.xlu0 %969
  %v972 = vmul.f32 %v953, %v970
  %973 = vmatprep.subr.bf16.mxu0 0
  %974 = vmatpush1.bf16.msra.mxu0 0
  %975 = vmatprep.subr.bf16.mxu0 0
  %976 = vmatpush1.bf16.msra.mxu0 0
  %977 = vmatprep.subr.bf16.mxu0 0
  %978 = vmatpush1.bf16.msra.mxu0 0
  %979 = vmatprep.subr.bf16.mxu0 0
  %980 = vmatpush1.bf16.msra.mxu0 0
  %981 = vmatprep.subr.bf16.mxu0 0
  %982 = vmatpush1.bf16.msra.mxu0 0
  %983 = vmatprep.subr.bf16.mxu0 0
  %984 = vmatpush1.bf16.msra.mxu0 0
  %985 = vmatprep.subr.bf16.mxu0 0
  %986 = vmatpush1.bf16.msra.mxu0 %v210
  %987 = vmatprep.subr.bf16.mxu0 0
  %988 = vmatpush1.bf16.msra.mxu0 %v209
  %989 = vmatprep.subr.bf16.mxu0 0
  %990 = vmatpush2.bf16.msra.mxu0 0
  %991 = vmatprep.subr.bf16.mxu0 0
  %992 = vmatpush2.bf16.msra.mxu0 0
  %993 = vmatprep.subr.bf16.mxu0 0
  %994 = vmatpush2.bf16.msra.mxu0 0
  %995 = vmatprep.subr.bf16.mxu0 0
  %996 = vmatpush2.bf16.msra.mxu0 0
  %997 = vmatprep.subr.bf16.mxu0 0
  %998 = vmatpush2.bf16.msra.mxu0 0
  %999 = vmatprep.subr.bf16.mxu0 0
  %1000 = vmatpush2.bf16.msra.mxu0 0
  %1001 = vmatprep.subr.bf16.mxu0 0
  %1002 = vmatpush2.bf16.msra.mxu0 0
  %1003 = vmatprep.subr.bf16.mxu0 0
  %1004 = vmatpush2.bf16.msra.mxu0 0
  %1005 = vmatprep.mubr.bf16.mxu0 0
  %1006 = vmatmul.mubr.bf16.gmra.mxu0 %v906
  %v1007 = vpop.f32.mrf.mxu0
  %v1008 = vadd.f32 0.0, %v1007
  %v1009 = vpop.f32.mrf.mxu0
  %v1010 = vpop.f32.mrf.mxu0
  %v1011 = vpop.f32.mrf.mxu0
  %1012 = vdwg.mxu0
  %v1013 = vpack.c.bf16 %v972, %v972
  %v1014 = vadd.f32 %v187, %v1008
  %v1015 = vxor.u32 %v1014, 2147483648
  %v1016 = vmul.f32 %v1015, 1.442695
  %v1017 = vpow.pop %v1016
  %v1018 = vadd.f32 %v1017, 1.0
  %v1019 = vrcp.pop %v1018
  %v1020 = vmul.f32 1.0, %v1019
  %v1021 = vmul.f32 %v1020, 2.0
  %v1022 = vsub.f32 %v1021, 1.0
  %v1023 = vmul.f32 %v1020, %v848
  %1025 = vrot.lane.b32.xlu0 %v1022, 64
  %v1026 = vpop.permute.xlu0 %1025
  %v1028 = vmul.f32 %v1020, %v1026
  %1030 = vrot.lane.b32.xlu0 %v1028, 32
  %v1031 = vpop.permute.xlu0 %1030
  %v1033 = vadd.f32 %v1023, %v1031
  %v1034 = vtanh.pop %v1033
  %1036 = vrot.lane.b32.xlu0 %v1034, 64
  %v1037 = vpop.permute.xlu0 %1036
  %v1039 = vmul.f32 %v1020, %v1037
  %v1040 = vpack.c.bf16 %v1039, %v1039
  %1042 = vrot.lane.b32.xlu0 %v1013, 32
  %v1043 = vpop.permute.xlu0 %1042
  %v1045 = vsel %vm123, %v1043, 0
  %1047 = vmatprep.subr.bf16.mxu0 0
  %1048 = vmatpush1.bf16.msra.mxu0 0
  %1049 = vmatprep.subr.bf16.mxu0 0
  %1050 = vmatpush1.bf16.msra.mxu0 0
  %1051 = vmatprep.subr.bf16.mxu0 0
  %1052 = vmatpush1.bf16.msra.mxu0 0
  %1053 = vmatprep.subr.bf16.mxu0 0
  %1054 = vmatpush1.bf16.msra.mxu0 0
  %1055 = vmatprep.subr.bf16.mxu0 0
  %1056 = vmatpush1.bf16.msra.mxu0 0
  %1057 = vmatprep.subr.bf16.mxu0 0
  %1058 = vmatpush1.bf16.msra.mxu0 0
  %1059 = vmatprep.subr.bf16.mxu0 0
  %1060 = vmatpush1.bf16.msra.mxu0 %v292
  %1061 = vmatprep.subr.bf16.mxu0 0
  %1062 = vmatpush1.bf16.msra.mxu0 %v291
  %1063 = vmatprep.subr.bf16.mxu0 0
  %1064 = vmatpush2.bf16.msra.mxu0 0
  %1065 = vmatprep.subr.bf16.mxu0 0
  %1066 = vmatpush2.bf16.msra.mxu0 0
  %1067 = vmatprep.subr.bf16.mxu0 0
  %1068 = vmatpush2.bf16.msra.mxu0 0
  %1069 = vmatprep.subr.bf16.mxu0 0
  %1070 = vmatpush2.bf16.msra.mxu0 0
  %1071 = vmatprep.subr.bf16.mxu0 0
  %1072 = vmatpush2.bf16.msra.mxu0 0
  %1073 = vmatprep.subr.bf16.mxu0 0
  %1074 = vmatpush2.bf16.msra.mxu0 0
  %1075 = vmatprep.subr.bf16.mxu0 0
  %1076 = vmatpush2.bf16.msra.mxu0 0
  %1077 = vmatprep.subr.bf16.mxu0 0
  %1078 = vmatpush2.bf16.msra.mxu0 0
  %1079 = vmatprep.mubr.bf16.mxu0 0
  %1080 = vmatmul.mubr.bf16.gmra.mxu0 %v1045
  %v1081 = vpop.f32.mrf.mxu0
  %v1082 = vadd.f32 %v34, %v1081
  %v1083 = vpop.f32.mrf.mxu0
  %v1084 = vpop.f32.mrf.mxu0
  %v1085 = vpop.f32.mrf.mxu0
  %1086 = vdwg.mxu0
  %1088 = vrot.lane.b32.xlu0 %v1040, 32
  %v1089 = vpop.permute.xlu0 %1088
  %v1091 = vsel %vm123, %v1089, 0
  %1093 = vmatprep.subr.bf16.mxu0 0
  %1094 = vmatpush1.bf16.msra.mxu0 0
  %1095 = vmatprep.subr.bf16.mxu0 0
  %1096 = vmatpush1.bf16.msra.mxu0 0
  %1097 = vmatprep.subr.bf16.mxu0 0
  %1098 = vmatpush1.bf16.msra.mxu0 0
  %1099 = vmatprep.subr.bf16.mxu0 0
  %1100 = vmatpush1.bf16.msra.mxu0 0
  %1101 = vmatprep.subr.bf16.mxu0 0
  %1102 = vmatpush1.bf16.msra.mxu0 0
  %1103 = vmatprep.subr.bf16.mxu0 0
  %1104 = vmatpush1.bf16.msra.mxu0 0
  %1105 = vmatprep.subr.bf16.mxu0 0
  %1106 = vmatpush1.bf16.msra.mxu0 %v347
  %1107 = vmatprep.subr.bf16.mxu0 0
  %1108 = vmatpush1.bf16.msra.mxu0 %v346
  %1109 = vmatprep.subr.bf16.mxu0 0
  %1110 = vmatpush2.bf16.msra.mxu0 0
  %1111 = vmatprep.subr.bf16.mxu0 0
  %1112 = vmatpush2.bf16.msra.mxu0 0
  %1113 = vmatprep.subr.bf16.mxu0 0
  %1114 = vmatpush2.bf16.msra.mxu0 0
  %1115 = vmatprep.subr.bf16.mxu0 0
  %1116 = vmatpush2.bf16.msra.mxu0 0
  %1117 = vmatprep.subr.bf16.mxu0 0
  %1118 = vmatpush2.bf16.msra.mxu0 0
  %1119 = vmatprep.subr.bf16.mxu0 0
  %1120 = vmatpush2.bf16.msra.mxu0 0
  %1121 = vmatprep.subr.bf16.mxu0 0
  %1122 = vmatpush2.bf16.msra.mxu0 0
  %1123 = vmatprep.subr.bf16.mxu0 0
  %1124 = vmatpush2.bf16.msra.mxu0 0
  %1125 = vmatprep.mubr.bf16.mxu0 0
  %1126 = vmatmul.mubr.bf16.gmra.mxu0 %v1091
  %v1127 = vpop.f32.mrf.mxu0
  %v1128 = vadd.f32 %v1082, %v1127
  %v1129 = vpop.f32.mrf.mxu0
  %v1130 = vpop.f32.mrf.mxu0
  %v1131 = vpop.f32.mrf.mxu0
  %1132 = vdwg.mxu0
  %v1133 = vxor.u32 %v1128, 2147483648
  %v1134 = vmul.f32 %v1133, 1.442695
  %v1135 = vpow.pop %v1134
  %v1136 = vadd.f32 %v1135, 1.0
  %v1137 = vrcp.pop %v1136
  %v1138 = vmul.f32 1.0, %v1137
  %v1139 = vmul.f32 %v1138, 2.0
  %v1140 = vsub.f32 %v1139, 1.0
  %v1141 = vmul.f32 %v1138, %v966
  %1143 = vrot.lane.b32.xlu0 %v1140, 64
  %v1144 = vpop.permute.xlu0 %1143
  %v1146 = vmul.f32 %v1138, %v1144
  %1148 = vrot.lane.b32.xlu0 %v1146, 32
  %v1149 = vpop.permute.xlu0 %1148
  %v1151 = vadd.f32 %v1141, %v1149
  %v1152 = vtanh.pop %v1151
  %1154 = vrot.lane.b32.xlu0 %v1152, 64
  %v1155 = vpop.permute.xlu0 %1154
  %v1157 = vmul.f32 %v1138, %v1155
  %1158 = vmatprep.subr.bf16.mxu0 0
  %1159 = vmatpush1.bf16.msra.mxu0 0
  %1160 = vmatprep.subr.bf16.mxu0 0
  %1161 = vmatpush1.bf16.msra.mxu0 0
  %1162 = vmatprep.subr.bf16.mxu0 0
  %1163 = vmatpush1.bf16.msra.mxu0 0
  %1164 = vmatprep.subr.bf16.mxu0 0
  %1165 = vmatpush1.bf16.msra.mxu0 0
  %1166 = vmatprep.subr.bf16.mxu0 0
  %1167 = vmatpush1.bf16.msra.mxu0 0
  %1168 = vmatprep.subr.bf16.mxu0 0
  %1169 = vmatpush1.bf16.msra.mxu0 0
  %1170 = vmatprep.subr.bf16.mxu0 0
  %1171 = vmatpush1.bf16.msra.mxu0 %v210
  %1172 = vmatprep.subr.bf16.mxu0 0
  %1173 = vmatpush1.bf16.msra.mxu0 %v209
  %1174 = vmatprep.subr.bf16.mxu0 0
  %1175 = vmatpush2.bf16.msra.mxu0 0
  %1176 = vmatprep.subr.bf16.mxu0 0
  %1177 = vmatpush2.bf16.msra.mxu0 0
  %1178 = vmatprep.subr.bf16.mxu0 0
  %1179 = vmatpush2.bf16.msra.mxu0 0
  %1180 = vmatprep.subr.bf16.mxu0 0
  %1181 = vmatpush2.bf16.msra.mxu0 0
  %1182 = vmatprep.subr.bf16.mxu0 0
  %1183 = vmatpush2.bf16.msra.mxu0 0
  %1184 = vmatprep.subr.bf16.mxu0 0
  %1185 = vmatpush2.bf16.msra.mxu0 0
  %1186 = vmatprep.subr.bf16.mxu0 0
  %1187 = vmatpush2.bf16.msra.mxu0 0
  %1188 = vmatprep.subr.bf16.mxu0 0
  %1189 = vmatpush2.bf16.msra.mxu0 0
  %1190 = vmatprep.mubr.bf16.mxu0 0
  %1191 = vmatmul.mubr.bf16.gmra.mxu0 %v1091
  %v1192 = vpop.f32.mrf.mxu0
  %v1193 = vadd.f32 0.0, %v1192
  %v1194 = vpop.f32.mrf.mxu0
  %v1195 = vpop.f32.mrf.mxu0
  %v1196 = vpop.f32.mrf.mxu0
  %1197 = vdwg.mxu0
  %v1198 = vpack.c.bf16 %v1157, %v1157
  %v1199 = vadd.f32 %v190, %v1193
  %v1200 = vxor.u32 %v1199, 2147483648
  %v1201 = vmul.f32 %v1200, 1.442695
  %v1202 = vpow.pop %v1201
  %v1203 = vadd.f32 %v1202, 1.0
  %v1204 = vrcp.pop %v1203
  %v1205 = vmul.f32 1.0, %v1204
  %v1206 = vmul.f32 %v1205, 2.0
  %v1207 = vsub.f32 %v1206, 1.0
  %v1208 = vmul.f32 %v1205, %v1033
  %1210 = vrot.lane.b32.xlu0 %v1207, 64
  %v1211 = vpop.permute.xlu0 %1210
  %v1213 = vmul.f32 %v1205, %v1211
  %1215 = vrot.lane.b32.xlu0 %v1213, 32
  %v1216 = vpop.permute.xlu0 %1215
  %v1218 = vadd.f32 %v1208, %v1216
  %v1219 = vtanh.pop %v1218
  %1221 = vrot.lane.b32.xlu0 %v1219, 64
  %v1222 = vpop.permute.xlu0 %1221
  %v1224 = vmul.f32 %v1205, %v1222
  %v1225 = vpack.c.bf16 %v1224, %v1224
  %1227 = vrot.lane.b32.xlu0 %v1198, 32
  %v1228 = vpop.permute.xlu0 %1227
  %v1230 = vsel %vm123, %v1228, 0
  %1232 = vmatprep.subr.bf16.mxu0 0
  %1233 = vmatpush1.bf16.msra.mxu0 0
  %1234 = vmatprep.subr.bf16.mxu0 0
  %1235 = vmatpush1.bf16.msra.mxu0 0
  %1236 = vmatprep.subr.bf16.mxu0 0
  %1237 = vmatpush1.bf16.msra.mxu0 0
  %1238 = vmatprep.subr.bf16.mxu0 0
  %1239 = vmatpush1.bf16.msra.mxu0 0
  %1240 = vmatprep.subr.bf16.mxu0 0
  %1241 = vmatpush1.bf16.msra.mxu0 0
  %1242 = vmatprep.subr.bf16.mxu0 0
  %1243 = vmatpush1.bf16.msra.mxu0 0
  %1244 = vmatprep.subr.bf16.mxu0 0
  %1245 = vmatpush1.bf16.msra.mxu0 %v292
  %1246 = vmatprep.subr.bf16.mxu0 0
  %1247 = vmatpush1.bf16.msra.mxu0 %v291
  %1248 = vmatprep.subr.bf16.mxu0 0
  %1249 = vmatpush2.bf16.msra.mxu0 0
  %1250 = vmatprep.subr.bf16.mxu0 0
  %1251 = vmatpush2.bf16.msra.mxu0 0
  %1252 = vmatprep.subr.bf16.mxu0 0
  %1253 = vmatpush2.bf16.msra.mxu0 0
  %1254 = vmatprep.subr.bf16.mxu0 0
  %1255 = vmatpush2.bf16.msra.mxu0 0
  %1256 = vmatprep.subr.bf16.mxu0 0
  %1257 = vmatpush2.bf16.msra.mxu0 0
  %1258 = vmatprep.subr.bf16.mxu0 0
  %1259 = vmatpush2.bf16.msra.mxu0 0
  %1260 = vmatprep.subr.bf16.mxu0 0
  %1261 = vmatpush2.bf16.msra.mxu0 0
  %1262 = vmatprep.subr.bf16.mxu0 0
  %1263 = vmatpush2.bf16.msra.mxu0 0
  %1264 = vmatprep.mubr.bf16.mxu0 0
  %1265 = vmatmul.mubr.bf16.gmra.mxu0 %v1230
  %v1266 = vpop.f32.mrf.mxu0
  %v1267 = vadd.f32 %v34, %v1266
  %v1268 = vpop.f32.mrf.mxu0
  %v1269 = vpop.f32.mrf.mxu0
  %v1270 = vpop.f32.mrf.mxu0
  %1271 = vdwg.mxu0
  %1273 = vrot.lane.b32.xlu0 %v1225, 32
  %v1274 = vpop.permute.xlu0 %1273
  %v1276 = vsel %vm123, %v1274, 0
  %1278 = vmatprep.subr.bf16.mxu0 0
  %1279 = vmatpush1.bf16.msra.mxu0 0
  %1280 = vmatprep.subr.bf16.mxu0 0
  %1281 = vmatpush1.bf16.msra.mxu0 0
  %1282 = vmatprep.subr.bf16.mxu0 0
  %1283 = vmatpush1.bf16.msra.mxu0 0
  %1284 = vmatprep.subr.bf16.mxu0 0
  %1285 = vmatpush1.bf16.msra.mxu0 0
  %1286 = vmatprep.subr.bf16.mxu0 0
  %1287 = vmatpush1.bf16.msra.mxu0 0
  %1288 = vmatprep.subr.bf16.mxu0 0
  %1289 = vmatpush1.bf16.msra.mxu0 0
  %1290 = vmatprep.subr.bf16.mxu0 0
  %1291 = vmatpush1.bf16.msra.mxu0 %v347
  %1292 = vmatprep.subr.bf16.mxu0 0
  %1293 = vmatpush1.bf16.msra.mxu0 %v346
  %1294 = vmatprep.subr.bf16.mxu0 0
  %1295 = vmatpush2.bf16.msra.mxu0 0
  %1296 = vmatprep.subr.bf16.mxu0 0
  %1297 = vmatpush2.bf16.msra.mxu0 0
  %1298 = vmatprep.subr.bf16.mxu0 0
  %1299 = vmatpush2.bf16.msra.mxu0 0
  %1300 = vmatprep.subr.bf16.mxu0 0
  %1301 = vmatpush2.bf16.msra.mxu0 0
  %1302 = vmatprep.subr.bf16.mxu0 0
  %1303 = vmatpush2.bf16.msra.mxu0 0
  %1304 = vmatprep.subr.bf16.mxu0 0
  %1305 = vmatpush2.bf16.msra.mxu0 0
  %1306 = vmatprep.subr.bf16.mxu0 0
  %1307 = vmatpush2.bf16.msra.mxu0 0
  %1308 = vmatprep.subr.bf16.mxu0 0
  %1309 = vmatpush2.bf16.msra.mxu0 0
  %1310 = vmatprep.mubr.bf16.mxu0 0
  %1311 = vmatmul.mubr.bf16.gmra.mxu0 %v1276
  %v1312 = vpop.f32.mrf.mxu0
  %v1313 = vadd.f32 %v1267, %v1312
  %v1314 = vpop.f32.mrf.mxu0
  %v1315 = vpop.f32.mrf.mxu0
  %v1316 = vpop.f32.mrf.mxu0
  %1317 = vdwg.mxu0
  %v1318 = vxor.u32 %v1313, 2147483648
  %v1319 = vmul.f32 %v1318, 1.442695
  %v1320 = vpow.pop %v1319
  %v1321 = vadd.f32 %v1320, 1.0
  %v1322 = vrcp.pop %v1321
  %v1323 = vmul.f32 1.0, %v1322
  %v1324 = vmul.f32 %v1323, 2.0
  %v1325 = vsub.f32 %v1324, 1.0
  %v1326 = vmul.f32 %v1323, %v1151
  %1328 = vrot.lane.b32.xlu0 %v1325, 64
  %v1329 = vpop.permute.xlu0 %1328
  %v1331 = vmul.f32 %v1323, %v1329
  %1333 = vrot.lane.b32.xlu0 %v1331, 32
  %v1334 = vpop.permute.xlu0 %1333
  %v1336 = vadd.f32 %v1326, %v1334
  %v1337 = vtanh.pop %v1336
  %1339 = vrot.lane.b32.xlu0 %v1337, 64
  %v1340 = vpop.permute.xlu0 %1339
  %v1342 = vmul.f32 %v1323, %v1340
  %1343 = vmatprep.subr.bf16.mxu0 0
  %1344 = vmatpush1.bf16.msra.mxu0 0
  %1345 = vmatprep.subr.bf16.mxu0 0
  %1346 = vmatpush1.bf16.msra.mxu0 0
  %1347 = vmatprep.subr.bf16.mxu0 0
  %1348 = vmatpush1.bf16.msra.mxu0 0
  %1349 = vmatprep.subr.bf16.mxu0 0
  %1350 = vmatpush1.bf16.msra.mxu0 0
  %1351 = vmatprep.subr.bf16.mxu0 0
  %1352 = vmatpush1.bf16.msra.mxu0 0
  %1353 = vmatprep.subr.bf16.mxu0 0
  %1354 = vmatpush1.bf16.msra.mxu0 0
  %1355 = vmatprep.subr.bf16.mxu0 0
  %1356 = vmatpush1.bf16.msra.mxu0 %v210
  %1357 = vmatprep.subr.bf16.mxu0 0
  %1358 = vmatpush1.bf16.msra.mxu0 %v209
  %1359 = vmatprep.subr.bf16.mxu0 0
  %1360 = vmatpush2.bf16.msra.mxu0 0
  %1361 = vmatprep.subr.bf16.mxu0 0
  %1362 = vmatpush2.bf16.msra.mxu0 0
  %1363 = vmatprep.subr.bf16.mxu0 0
  %1364 = vmatpush2.bf16.msra.mxu0 0
  %1365 = vmatprep.subr.bf16.mxu0 0
  %1366 = vmatpush2.bf16.msra.mxu0 0
  %1367 = vmatprep.subr.bf16.mxu0 0
  %1368 = vmatpush2.bf16.msra.mxu0 0
  %1369 = vmatprep.subr.bf16.mxu0 0
  %1370 = vmatpush2.bf16.msra.mxu0 0
  %1371 = vmatprep.subr.bf16.mxu0 0
  %1372 = vmatpush2.bf16.msra.mxu0 0
  %1373 = vmatprep.subr.bf16.mxu0 0
  %1374 = vmatpush2.bf16.msra.mxu0 0
  %1375 = vmatprep.mubr.bf16.mxu0 0
  %1376 = vmatmul.mubr.bf16.gmra.mxu0 %v1276
  %v1377 = vpop.f32.mrf.mxu0
  %v1378 = vadd.f32 0.0, %v1377
  %v1379 = vpop.f32.mrf.mxu0
  %v1380 = vpop.f32.mrf.mxu0
  %v1381 = vpop.f32.mrf.mxu0
  %1382 = vdwg.mxu0
  %v1383 = vpack.c.bf16 %v1342, %v1342
  %v1384 = vadd.f32 %v195, %v1378
  %v1385 = vxor.u32 %v1384, 2147483648
  %v1386 = vmul.f32 %v1385, 1.442695
  %v1387 = vpow.pop %v1386
  %v1388 = vadd.f32 %v1387, 1.0
  %v1389 = vrcp.pop %v1388
  %v1390 = vmul.f32 1.0, %v1389
  %v1391 = vmul.f32 %v1390, 2.0
  %v1392 = vsub.f32 %v1391, 1.0
  %v1393 = vmul.f32 %v1390, %v1218
  %1395 = vrot.lane.b32.xlu0 %v1392, 64
  %v1396 = vpop.permute.xlu0 %1395
  %v1398 = vmul.f32 %v1390, %v1396
  %1400 = vrot.lane.b32.xlu0 %v1398, 32
  %v1401 = vpop.permute.xlu0 %1400
  %v1403 = vadd.f32 %v1393, %v1401
  %v1404 = vtanh.pop %v1403
  %1406 = vrot.lane.b32.xlu0 %v1404, 64
  %v1407 = vpop.permute.xlu0 %1406
  %v1409 = vmul.f32 %v1390, %v1407
  %v1410 = vpack.c.bf16 %v1409, %v1409
  %1412 = vrot.lane.b32.xlu0 %v1383, 32
  %v1413 = vpop.permute.xlu0 %1412
  %v1415 = vsel %vm123, %v1413, 0
  %1417 = vmatprep.subr.bf16.mxu0 0
  %1418 = vmatpush1.bf16.msra.mxu0 0
  %1419 = vmatprep.subr.bf16.mxu0 0
  %1420 = vmatpush1.bf16.msra.mxu0 0
  %1421 = vmatprep.subr.bf16.mxu0 0
  %1422 = vmatpush1.bf16.msra.mxu0 0
  %1423 = vmatprep.subr.bf16.mxu0 0
  %1424 = vmatpush1.bf16.msra.mxu0 0
  %1425 = vmatprep.subr.bf16.mxu0 0
  %1426 = vmatpush1.bf16.msra.mxu0 0
  %1427 = vmatprep.subr.bf16.mxu0 0
  %1428 = vmatpush1.bf16.msra.mxu0 0
  %1429 = vmatprep.subr.bf16.mxu0 0
  %1430 = vmatpush1.bf16.msra.mxu0 %v292
  %1431 = vmatprep.subr.bf16.mxu0 0
  %1432 = vmatpush1.bf16.msra.mxu0 %v291
  %1433 = vmatprep.subr.bf16.mxu0 0
  %1434 = vmatpush2.bf16.msra.mxu0 0
  %1435 = vmatprep.subr.bf16.mxu0 0
  %1436 = vmatpush2.bf16.msra.mxu0 0
  %1437 = vmatprep.subr.bf16.mxu0 0
  %1438 = vmatpush2.bf16.msra.mxu0 0
  %1439 = vmatprep.subr.bf16.mxu0 0
  %1440 = vmatpush2.bf16.msra.mxu0 0
  %1441 = vmatprep.subr.bf16.mxu0 0
  %1442 = vmatpush2.bf16.msra.mxu0 0
  %1443 = vmatprep.subr.bf16.mxu0 0
  %1444 = vmatpush2.bf16.msra.mxu0 0
  %1445 = vmatprep.subr.bf16.mxu0 0
  %1446 = vmatpush2.bf16.msra.mxu0 0
  %1447 = vmatprep.subr.bf16.mxu0 0
  %1448 = vmatpush2.bf16.msra.mxu0 0
  %1449 = vmatprep.mubr.bf16.mxu0 0
  %1450 = vmatmul.mubr.bf16.gmra.mxu0 %v1415
  %v1451 = vpop.f32.mrf.mxu0
  %v1452 = vadd.f32 %v34, %v1451
  %v1453 = vpop.f32.mrf.mxu0
  %v1454 = vpop.f32.mrf.mxu0
  %v1455 = vpop.f32.mrf.mxu0
  %1456 = vdwg.mxu0
  %1458 = vrot.lane.b32.xlu0 %v1410, 32
  %v1459 = vpop.permute.xlu0 %1458
  %v1461 = vsel %vm123, %v1459, 0
  %1463 = vmatprep.subr.bf16.mxu0 0
  %1464 = vmatpush1.bf16.msra.mxu0 0
  %1465 = vmatprep.subr.bf16.mxu0 0
  %1466 = vmatpush1.bf16.msra.mxu0 0
  %1467 = vmatprep.subr.bf16.mxu0 0
  %1468 = vmatpush1.bf16.msra.mxu0 0
  %1469 = vmatprep.subr.bf16.mxu0 0
  %1470 = vmatpush1.bf16.msra.mxu0 0
  %1471 = vmatprep.subr.bf16.mxu0 0
  %1472 = vmatpush1.bf16.msra.mxu0 0
  %1473 = vmatprep.subr.bf16.mxu0 0
  %1474 = vmatpush1.bf16.msra.mxu0 0
  %1475 = vmatprep.subr.bf16.mxu0 0
  %1476 = vmatpush1.bf16.msra.mxu0 %v347
  %1477 = vmatprep.subr.bf16.mxu0 0
  %1478 = vmatpush1.bf16.msra.mxu0 %v346
  %1479 = vmatprep.subr.bf16.mxu0 0
  %1480 = vmatpush2.bf16.msra.mxu0 0
  %1481 = vmatprep.subr.bf16.mxu0 0
  %1482 = vmatpush2.bf16.msra.mxu0 0
  %1483 = vmatprep.subr.bf16.mxu0 0
  %1484 = vmatpush2.bf16.msra.mxu0 0
  %1485 = vmatprep.subr.bf16.mxu0 0
  %1486 = vmatpush2.bf16.msra.mxu0 0
  %1487 = vmatprep.subr.bf16.mxu0 0
  %1488 = vmatpush2.bf16.msra.mxu0 0
  %1489 = vmatprep.subr.bf16.mxu0 0
  %1490 = vmatpush2.bf16.msra.mxu0 0
  %1491 = vmatprep.subr.bf16.mxu0 0
  %1492 = vmatpush2.bf16.msra.mxu0 0
  %1493 = vmatprep.subr.bf16.mxu0 0
  %1494 = vmatpush2.bf16.msra.mxu0 0
  %1495 = vmatprep.mubr.bf16.mxu0 0
  %1496 = vmatmul.mubr.bf16.gmra.mxu0 %v1461
  %v1497 = vpop.f32.mrf.mxu0
  %v1498 = vadd.f32 %v1452, %v1497
  %v1499 = vpop.f32.mrf.mxu0
  %v1500 = vpop.f32.mrf.mxu0
  %v1501 = vpop.f32.mrf.mxu0
  %1502 = vdwg.mxu0
  %v1503 = vxor.u32 %v1498, 2147483648
  %v1504 = vmul.f32 %v1503, 1.442695
  %v1505 = vpow.pop %v1504
  %v1506 = vadd.f32 %v1505, 1.0
  %v1507 = vrcp.pop %v1506
  %v1508 = vmul.f32 1.0, %v1507
  %v1509 = vmul.f32 %v1508, 2.0
  %v1510 = vsub.f32 %v1509, 1.0
  %v1511 = vmul.f32 %v1508, %v1336
  %1513 = vrot.lane.b32.xlu0 %v1510, 64
  %v1514 = vpop.permute.xlu0 %1513
  %v1516 = vmul.f32 %v1508, %v1514
  %1518 = vrot.lane.b32.xlu0 %v1516, 32
  %v1519 = vpop.permute.xlu0 %1518
  %v1521 = vadd.f32 %v1511, %v1519
  %v1522 = vtanh.pop %v1521
  %1524 = vrot.lane.b32.xlu0 %v1522, 64
  %v1525 = vpop.permute.xlu0 %1524
  %v1527 = vmul.f32 %v1508, %v1525
  %1528 = vmatprep.subr.bf16.mxu0 0
  %1529 = vmatpush1.bf16.msra.mxu0 0
  %1530 = vmatprep.subr.bf16.mxu0 0
  %1531 = vmatpush1.bf16.msra.mxu0 0
  %1532 = vmatprep.subr.bf16.mxu0 0
  %1533 = vmatpush1.bf16.msra.mxu0 0
  %1534 = vmatprep.subr.bf16.mxu0 0
  %1535 = vmatpush1.bf16.msra.mxu0 0
  %1536 = vmatprep.subr.bf16.mxu0 0
  %1537 = vmatpush1.bf16.msra.mxu0 0
  %1538 = vmatprep.subr.bf16.mxu0 0
  %1539 = vmatpush1.bf16.msra.mxu0 0
  %1540 = vmatprep.subr.bf16.mxu0 0
  %1541 = vmatpush1.bf16.msra.mxu0 %v210
  %1542 = vmatprep.subr.bf16.mxu0 0
  %1543 = vmatpush1.bf16.msra.mxu0 %v209
  %1544 = vmatprep.subr.bf16.mxu0 0
  %1545 = vmatpush2.bf16.msra.mxu0 0
  %1546 = vmatprep.subr.bf16.mxu0 0
  %1547 = vmatpush2.bf16.msra.mxu0 0
  %1548 = vmatprep.subr.bf16.mxu0 0
  %1549 = vmatpush2.bf16.msra.mxu0 0
  %1550 = vmatprep.subr.bf16.mxu0 0
  %1551 = vmatpush2.bf16.msra.mxu0 0
  %1552 = vmatprep.subr.bf16.mxu0 0
  %1553 = vmatpush2.bf16.msra.mxu0 0
  %1554 = vmatprep.subr.bf16.mxu0 0
  %1555 = vmatpush2.bf16.msra.mxu0 0
  %1556 = vmatprep.subr.bf16.mxu0 0
  %1557 = vmatpush2.bf16.msra.mxu0 0
  %1558 = vmatprep.subr.bf16.mxu0 0
  %1559 = vmatpush2.bf16.msra.mxu0 0
  %1560 = vmatprep.mubr.bf16.mxu0 0
  %1561 = vmatmul.mubr.bf16.gmra.mxu0 %v1461
  %v1562 = vpop.f32.mrf.mxu0
  %v1563 = vadd.f32 0.0, %v1562
  %v1564 = vpop.f32.mrf.mxu0
  %v1565 = vpop.f32.mrf.mxu0
  %v1566 = vpop.f32.mrf.mxu0
  %1567 = vdwg.mxu0
  %v1568 = vpack.c.bf16 %v1527, %v1527
  %v1569 = vadd.f32 %v198, %v1563
  %v1570 = vxor.u32 %v1569, 2147483648
  %v1571 = vmul.f32 %v1570, 1.442695
  %v1572 = vpow.pop %v1571
  %v1573 = vadd.f32 %v1572, 1.0
  %v1574 = vrcp.pop %v1573
  %v1575 = vmul.f32 1.0, %v1574
  %v1576 = vmul.f32 %v1575, 2.0
  %v1577 = vsub.f32 %v1576, 1.0
  %v1578 = vmul.f32 %v1575, %v1403
  %1580 = vrot.lane.b32.xlu0 %v1577, 64
  %v1581 = vpop.permute.xlu0 %1580
  %v1583 = vmul.f32 %v1575, %v1581
  %1585 = vrot.lane.b32.xlu0 %v1583, 32
  %v1586 = vpop.permute.xlu0 %1585
  %v1588 = vadd.f32 %v1578, %v1586
  %v1589 = vtanh.pop %v1588
  %1591 = vrot.lane.b32.xlu0 %v1589, 64
  %v1592 = vpop.permute.xlu0 %1591
  %v1594 = vmul.f32 %v1575, %v1592
  %v1595 = vpack.c.bf16 %v1594, %v1594
  %1597 = vrot.lane.b32.xlu0 %v1568, 32
  %v1598 = vpop.permute.xlu0 %1597
  %v1600 = vsel %vm123, %v1598, 0
  %1602 = vmatprep.subr.bf16.mxu0 0
  %1603 = vmatpush1.bf16.msra.mxu0 0
  %1604 = vmatprep.subr.bf16.mxu0 0
  %1605 = vmatpush1.bf16.msra.mxu0 0
  %1606 = vmatprep.subr.bf16.mxu0 0
  %1607 = vmatpush1.bf16.msra.mxu0 0
  %1608 = vmatprep.subr.bf16.mxu0 0
  %1609 = vmatpush1.bf16.msra.mxu0 0
  %1610 = vmatprep.subr.bf16.mxu0 0
  %1611 = vmatpush1.bf16.msra.mxu0 0
  %1612 = vmatprep.subr.bf16.mxu0 0
  %1613 = vmatpush1.bf16.msra.mxu0 0
  %1614 = vmatprep.subr.bf16.mxu0 0
  %1615 = vmatpush1.bf16.msra.mxu0 %v292
  %1616 = vmatprep.subr.bf16.mxu0 0
  %1617 = vmatpush1.bf16.msra.mxu0 %v291
  %1618 = vmatprep.subr.bf16.mxu0 0
  %1619 = vmatpush2.bf16.msra.mxu0 0
  %1620 = vmatprep.subr.bf16.mxu0 0
  %1621 = vmatpush2.bf16.msra.mxu0 0
  %1622 = vmatprep.subr.bf16.mxu0 0
  %1623 = vmatpush2.bf16.msra.mxu0 0
  %1624 = vmatprep.subr.bf16.mxu0 0
  %1625 = vmatpush2.bf16.msra.mxu0 0
  %1626 = vmatprep.subr.bf16.mxu0 0
  %1627 = vmatpush2.bf16.msra.mxu0 0
  %1628 = vmatprep.subr.bf16.mxu0 0
  %1629 = vmatpush2.bf16.msra.mxu0 0
  %1630 = vmatprep.subr.bf16.mxu0 0
  %1631 = vmatpush2.bf16.msra.mxu0 0
  %1632 = vmatprep.subr.bf16.mxu0 0
  %1633 = vmatpush2.bf16.msra.mxu0 0
  %1634 = vmatprep.mubr.bf16.mxu0 0
  %1635 = vmatmul.mubr.bf16.gmra.mxu0 %v1600
  %v1636 = vpop.f32.mrf.mxu0
  %v1637 = vadd.f32 %v34, %v1636
  %v1638 = vpop.f32.mrf.mxu0
  %v1639 = vpop.f32.mrf.mxu0
  %v1640 = vpop.f32.mrf.mxu0
  %1641 = vdwg.mxu0
  %1643 = vrot.lane.b32.xlu0 %v1595, 32
  %v1644 = vpop.permute.xlu0 %1643
  %v1646 = vsel %vm123, %v1644, 0
  %1648 = vmatprep.subr.bf16.mxu0 0
  %1649 = vmatpush1.bf16.msra.mxu0 0
  %1650 = vmatprep.subr.bf16.mxu0 0
  %1651 = vmatpush1.bf16.msra.mxu0 0
  %1652 = vmatprep.subr.bf16.mxu0 0
  %1653 = vmatpush1.bf16.msra.mxu0 0
  %1654 = vmatprep.subr.bf16.mxu0 0
  %1655 = vmatpush1.bf16.msra.mxu0 0
  %1656 = vmatprep.subr.bf16.mxu0 0
  %1657 = vmatpush1.bf16.msra.mxu0 0
  %1658 = vmatprep.subr.bf16.mxu0 0
  %1659 = vmatpush1.bf16.msra.mxu0 0
  %1660 = vmatprep.subr.bf16.mxu0 0
  %1661 = vmatpush1.bf16.msra.mxu0 %v347
  %1662 = vmatprep.subr.bf16.mxu0 0
  %1663 = vmatpush1.bf16.msra.mxu0 %v346
  %1664 = vmatprep.subr.bf16.mxu0 0
  %1665 = vmatpush2.bf16.msra.mxu0 0
  %1666 = vmatprep.subr.bf16.mxu0 0
  %1667 = vmatpush2.bf16.msra.mxu0 0
  %1668 = vmatprep.subr.bf16.mxu0 0
  %1669 = vmatpush2.bf16.msra.mxu0 0
  %1670 = vmatprep.subr.bf16.mxu0 0
  %1671 = vmatpush2.bf16.msra.mxu0 0
  %1672 = vmatprep.subr.bf16.mxu0 0
  %1673 = vmatpush2.bf16.msra.mxu0 0
  %1674 = vmatprep.subr.bf16.mxu0 0
  %1675 = vmatpush2.bf16.msra.mxu0 0
  %1676 = vmatprep.subr.bf16.mxu0 0
  %1677 = vmatpush2.bf16.msra.mxu0 0
  %1678 = vmatprep.subr.bf16.mxu0 0
  %1679 = vmatpush2.bf16.msra.mxu0 0
  %1680 = vmatprep.mubr.bf16.mxu0 0
  %1681 = vmatmul.mubr.bf16.gmra.mxu0 %v1646
  %v1682 = vpop.f32.mrf.mxu0
  %v1683 = vadd.f32 %v1637, %v1682
  %v1684 = vpop.f32.mrf.mxu0
  %v1685 = vpop.f32.mrf.mxu0
  %v1686 = vpop.f32.mrf.mxu0
  %1687 = vdwg.mxu0
  %v1688 = vxor.u32 %v1683, 2147483648
  %v1689 = vmul.f32 %v1688, 1.442695
  %v1690 = vpow.pop %v1689
  %v1691 = vadd.f32 %v1690, 1.0
  %v1692 = vrcp.pop %v1691
  %v1693 = vmul.f32 1.0, %v1692
  %v1694 = vmul.f32 %v1693, 2.0
  %v1695 = vsub.f32 %v1694, 1.0
  %v1696 = vmul.f32 %v1693, %v1521
  %1698 = vrot.lane.b32.xlu0 %v1695, 64
  %v1699 = vpop.permute.xlu0 %1698
  %v1701 = vmul.f32 %v1693, %v1699
  %1703 = vrot.lane.b32.xlu0 %v1701, 32
  %v1704 = vpop.permute.xlu0 %1703
  %v1706 = vadd.f32 %v1696, %v1704
  %v1707 = vtanh.pop %v1706
  %1709 = vrot.lane.b32.xlu0 %v1707, 64
  %v1710 = vpop.permute.xlu0 %1709
  %v1712 = vmul.f32 %v1693, %v1710
  %v1713 = vld [vmem:[%s2 + $0x5] ss:$0 sm:$0xff]
  %v1714 = vld [vmem:[%s2 + $0x3] ss:$0 sm:$0xff]
  %1716 = vrot.lane.b32.xlu0 %v1714, 96
  %v1717 = vpop.permute.xlu0 %1716
  %v1719 = vmul.f32 %v1594, %v1717
  %1721 = vrot.lane.b32.xlu0 %v1719, 32
  %v1722 = vpop.permute.xlu0 %1721
  %v1724 = vsel %vm123, %v1722, 0.0
  %1725 = vadd.xlane.f32.xlu0 %v1724
  %v1726 = vpop.xlane.xlu0 %1725
  %v1727 = vadd.f32 %v1713, %v1726
  %v1728 = vld [vmem:[%s2 + $0x4] ss:$0 sm:$0xff]
  %1730 = vrot.lane.b32.xlu0 %v1728, 96
  %v1731 = vpop.permute.xlu0 %1730
  %v1733 = vmul.f32 %v1712, %v1731
  %1735 = vrot.lane.b32.xlu0 %v1733, 32
  %v1736 = vpop.permute.xlu0 %1735
  %v1738 = vsel %vm123, %v1736, 0.0
  %1739 = vadd.xlane.f32.xlu0 %v1738
  %v1740 = vpop.xlane.xlu0 %1739
  %v1741 = vadd.f32 %v1727, %v1740
  %vm1742 = vcmask 7168
  %1743 = vst.msk [vmem:[%s3] sm:$0xff] %vm1742, %v1741
  // Predicated region
  $region14: #{lstm_model_forward.1} parent=0 // pred_check
    _
  $region15: #{lstm_model_forward.1} parent=0 // pred_check_branch
    %1745 = sbr.rel (0) target = $region17
  $region16: #{lstm_model_forward.1} parent=0 // pred_region
    _
  $region17: #{lstm_model_forward.1} parent=0 // pred_fallthru
    _
  // Predicated region
  $region18: #{lstm_model_forward.1} parent=0 // pred_check
    _
  $region19: #{lstm_model_forward.1} parent=0 // pred_check_branch
    %1747 = sbr.rel (0) target = $region21
  $region20: #{lstm_model_forward.1} parent=0 // pred_region
    _
  $region21: #{lstm_model_forward.1} parent=0 // pred_fallthru
    _

</llo_original>
